<compile_context>
chip_gen: v6e
topology: v6e:2x2x1
jax: 0.10.0
libtpu: 0.0.40
codegen_flags: <defaults>
</compile_context>

<pallas_src>
import math
import functools

import jax
import jax.numpy as jnp
from jax.experimental import pallas as pl
from jax.experimental.pallas import tpu as pltpu


# ---------------------------------------------------------------------------
# Shared math helpers (used inside the Pallas kernel and by the reference)
# ---------------------------------------------------------------------------
def _layernorm(x, gamma, beta, eps=1e-5):
    mean = jnp.mean(x, axis=-1, keepdims=True)
    var = jnp.mean(jnp.square(x - mean), axis=-1, keepdims=True)
    return (x - mean) * jax.lax.rsqrt(var + eps) * gamma + beta


# ---------------------------------------------------------------------------
# Parameter slab packing.
# Per encoder block (d_model = D, dff = 4D), canonical order:
#   matrices: wq(D,D) wk(D,D) wv(D,D) wo(D,D) w1(D,4D) w2(4D,D)   (pre-transposed)
#   vectors : bq bk bv bo (D,), b1 (4D,), b2 g1 be1 g2 be2 (D,)
# Each matrix / vector occupies its own row range of the slab (column 0-based),
# so the kernel only does static row slices -> no odd-lane-offset relayouts.
# ---------------------------------------------------------------------------
def _block_row_count(d):
    return 9 * d + 10


def pack_params(blocks, slab_width):
    rows = []

    def pad_cols(a):
        return jnp.pad(a, ((0, 0), (0, slab_width - a.shape[1])))

    for p in blocks:
        (wq, wk, wv, wo, w1, w2, bq, bk, bv, bo, b1, b2, g1, be1, g2, be2) = p
        for m in (wq, wk, wv, wo, w1, w2):
            rows.append(pad_cols(m))
        for vec in (bq, bk, bv, bo, b1, b2, g1, be1, g2, be2):
            rows.append(pad_cols(vec.reshape(1, -1)))
    return jnp.concatenate(rows, axis=0)


def _read_block_params(slab_ref, row0, d):
    """Static row slices of the parameter slab for one encoder block."""
    dff = 4 * d
    out = []
    r = row0
    for nrows, ncols in ((d, d), (d, d), (d, d), (d, d), (d, dff), (dff, d)):
        out.append(slab_ref[r:r + nrows, 0:ncols])
        r += nrows
    for ncols in (d, d, d, d, dff, d, d, d, d, d):
        out.append(slab_ref[r:r + 1, 0:ncols])          # (1, ncols) -> broadcasts
        r += 1
    return out


# ---------------------------------------------------------------------------
# Fused Pallas kernel
# ---------------------------------------------------------------------------
def _encoder_block(x, params):
    """One PyTorch TransformerEncoderLayer (nhead=1, post-LN, relu), whole batch.

    x: (B, S, D) float32.  Attention is computed on the flattened (B*S, D)
    activations with a block-diagonal mask so every matmul is a single 2-D
    MXU push (no batched-dot unrolling).
    """
    (wq, wk, wv, wo, w1, w2, bq, bk, bv, bo, b1, b2, g1, be1, g2, be2) = params
    B, S, D = x.shape
    N = B * S
    x2 = x.reshape(N, D)                                       # free reshape

    q = jnp.dot(x2, wq, preferred_element_type=jnp.float32) + bq
    k = jnp.dot(x2, wk, preferred_element_type=jnp.float32) + bk
    v = jnp.dot(x2, wv, preferred_element_type=jnp.float32) + bv

    # flat (N, N) scores, cross-batch entries masked to -inf-ish
    scores = jnp.einsum('qd,kd->qk', q, k,
                        preferred_element_type=jnp.float32) * (1.0 / math.sqrt(D))
    row_b = jax.lax.broadcasted_iota(jnp.int32, (B, S, N), 0).reshape(N, N)
    col_b = jax.lax.broadcasted_iota(jnp.int32, (N, B, S), 1).reshape(N, N)
    scores = jnp.where(row_b == col_b, scores, -1e30)

    scores = scores - jnp.max(scores, axis=-1, keepdims=True)
    p = jnp.exp(scores)
    p = p / jnp.sum(p, axis=-1, keepdims=True)                 # exact divide
    attn = jnp.dot(p, v, preferred_element_type=jnp.float32)   # (N, D)

    # output projection + residual + LayerNorm1 (post-LN)
    attn = jnp.dot(attn, wo, preferred_element_type=jnp.float32) + bo
    y = _layernorm(x2 + attn, g1, be1)

    # feed-forward (relu) + residual + LayerNorm2 (post-LN)
    hdn = jnp.maximum(jnp.dot(y, w1, preferred_element_type=jnp.float32) + b1, 0.0)
    hdn = jnp.dot(hdn, w2, preferred_element_type=jnp.float32) + b2
    y = _layernorm(y + hdn, g2, be2)

    return y.reshape(B, S, D)


def make_fused_kernel(h, w, layers):
    dims = [w, h] * layers                     # d_model of each encoder block
    row_offsets = []
    r = 0
    for d in dims:
        row_offsets.append(r)
        r += _block_row_count(d)
    softmax_axis = 1 if w < h else 2

    def kernel(x_ref, slab_ref, o_ref):
        x = x_ref[...].astype(jnp.float32)                     # (B, h, w)

        # [TrEnc(w), Permute, TrEnc(h), Permute] * layers — statically unrolled
        for d, r0 in zip(dims, row_offsets):
            x = _encoder_block(x, _read_block_params(slab_ref, r0, d))
            x = jnp.transpose(x, (0, 2, 1))                    # Permute(0,2,1)

        # fused epilogue: nn.Softmax(dim=1 if w<h else 2), exact divide
        m = jnp.max(x, axis=softmax_axis, keepdims=True)
        e = jnp.exp(x - m)
        o_ref[...] = (e / jnp.sum(e, axis=softmax_axis, keepdims=True)
                      ).astype(o_ref.dtype)

    return kernel


# ---------------------------------------------------------------------------
# Wrapper: single fused pallas_call, no grid, two VMEM-resident inputs
# ---------------------------------------------------------------------------
def my_tr_model_forward(x, slab, h, w, layers):
    B = x.shape[0]
    vmem = pl.BlockSpec(memory_space=pltpu.MemorySpace.VMEM)
    return pl.pallas_call(
        make_fused_kernel(h, w, layers),
        out_shape=jax.ShapeDtypeStruct((B, h, w), x.dtype),
        in_specs=[vmem, vmem],
        out_specs=vmem,
    )(x, slab)


# ---------------------------------------------------------------------------
# Parameter init (deterministic, synthetic) — stored pre-transposed
# ---------------------------------------------------------------------------
def init_encoder_block_params(key, d_model):
    dff = 4 * d_model
    ks = jax.random.split(key, 8)
    s = 1.0 / math.sqrt(d_model)
    # PyTorch MHA in_proj_weight is (3D, D) packed rows [q; k; v]
    in_proj = jax.random.normal(ks[0], (3 * d_model, d_model), jnp.float32) * s
    wq = in_proj[:d_model].T
    wk = in_proj[d_model:2 * d_model].T
    wv = in_proj[2 * d_model:].T
    wo = (jax.random.normal(ks[1], (d_model, d_model), jnp.float32) * s).T
    w1 = (jax.random.normal(ks[2], (dff, d_model), jnp.float32) * s).T           # (D, 4D)
    w2 = (jax.random.normal(ks[3], (d_model, dff), jnp.float32)
          / math.sqrt(dff)).T                                                    # (4D, D)
    bq = jax.random.normal(ks[4], (d_model,), jnp.float32) * 0.02
    bk = jax.random.normal(ks[5], (d_model,), jnp.float32) * 0.02
    bv = jax.random.normal(ks[6], (d_model,), jnp.float32) * 0.02
    bo = jnp.zeros((d_model,), jnp.float32)
    b1 = jax.random.normal(ks[7], (dff,), jnp.float32) * 0.02
    b2 = jnp.zeros((d_model,), jnp.float32)
    g1 = jnp.ones((d_model,), jnp.float32)
    be1 = jnp.zeros((d_model,), jnp.float32)
    g2 = jnp.ones((d_model,), jnp.float32)
    be2 = jnp.zeros((d_model,), jnp.float32)
    return (wq, wk, wv, wo, w1, w2, bq, bk, bv, bo, b1, b2, g1, be1, g2, be2)


def init_my_tr_model(key, h, w, layers):
    keys = jax.random.split(key, 2 * layers)
    blocks = []
    for l in range(layers):
        blocks.append(init_encoder_block_params(keys[2 * l], w))       # d_model = w
        blocks.append(init_encoder_block_params(keys[2 * l + 1], h))   # d_model = h
    return blocks


# ---------------------------------------------------------------------------
# Pure-JAX reference (batched ops, exact softmax, high-precision dots)
# ---------------------------------------------------------------------------
def _reference_forward(x, blocks, h, w):
    prec = jax.lax.Precision.HIGHEST

    def block(x, p):
        (wq, wk, wv, wo, w1, w2, bq, bk, bv, bo, b1, b2, g1, be1, g2, be2) = p
        D = x.shape[-1]
        q = jnp.einsum('bsd,de->bse', x, wq, precision=prec) + bq
        k = jnp.einsum('bsd,de->bse', x, wk, precision=prec) + bk
        v = jnp.einsum('bsd,de->bse', x, wv, precision=prec) + bv
        s = jnp.einsum('bqd,bkd->bqk', q, k, precision=prec) / math.sqrt(D)
        a = jnp.einsum('bqk,bkd->bqd', jax.nn.softmax(s, axis=-1), v, precision=prec)
        a = jnp.einsum('bsd,de->bse', a, wo, precision=prec) + bo
        y = _layernorm(x + a, g1, be1)
        f = jnp.maximum(jnp.einsum('bsd,df->bsf', y, w1, precision=prec) + b1, 0.0)
        f = jnp.einsum('bsf,fd->bsd', f, w2, precision=prec) + b2
        return _layernorm(y + f, g2, be2)

    for p in blocks:
        x = jnp.transpose(block(x, p), (0, 2, 1))
    return jax.nn.softmax(x, axis=(1 if w < h else 2))


# ---------------------------------------------------------------------------
if __name__ == "__main__":
    B, H, W = 2, 8, 16
    LAYERS = 1

    key = jax.random.PRNGKey(0)
    k_param, k_x = jax.random.split(key)
    blocks = init_my_tr_model(k_param, H, W, LAYERS)
    slab = pack_params(blocks, slab_width=4 * max(H, W))
    x = jax.random.normal(k_x, (B, H, W), jnp.float32)

    fwd = jax.jit(functools.partial(my_tr_model_forward, h=H, w=W, layers=LAYERS))
    out = jax.block_until_ready(fwd(x, slab))

    assert out.shape == (B, H, W)
    # final softmax rows sum to 1 (exact divide -> tight tolerance)
    sm_axis = 1 if W < H else 2
    sums = jnp.sum(out, axis=sm_axis)
    assert bool(jnp.allclose(sums, 1.0, atol=1e-4)), \
        float(jnp.max(jnp.abs(sums - 1.0)))
    # full-model check vs pure-JAX reference
    ref = _reference_forward(x, blocks, H, W)
    assert bool(jnp.allclose(out, ref, atol=2e-2)), \
        float(jnp.max(jnp.abs(out - ref)))
    print("KERNEL_OK")
</pallas_src>

<mosaic_0001>
module attributes {stable_mosaic.version = 11 : i64} {
  func.func @kernel(%arg0: memref<2x8x16xf32, #tpu.memory_space<vmem>>, %arg1: memref<236x64xf32, #tpu.memory_space<vmem>>, %arg2: memref<2x8x16xf32, #tpu.memory_space<vmem>>) attributes {dimension_semantics = [], scalar_prefetch = 0 : i64, scratch_operands = 0 : i64, tpu.core_type = #tpu.core_type<tc>} {
    %c0 = arith.constant 0 : index
    %c0_0 = arith.constant 0 : index
    %c0_1 = arith.constant 0 : index
    %0 = vector.load %arg0[%c0, %c0_0, %c0_1] : memref<2x8x16xf32, #tpu.memory_space<vmem>>, vector<2x8x16xf32>
    %c0_2 = arith.constant 0 : index
    %c0_3 = arith.constant 0 : index
    %1 = vector.load %arg1[%c0_2, %c0_3] : memref<236x64xf32, #tpu.memory_space<vmem>>, vector<16x16xf32>
    %c16 = arith.constant 16 : index
    %c0_4 = arith.constant 0 : index
    %2 = vector.load %arg1[%c16, %c0_4] : memref<236x64xf32, #tpu.memory_space<vmem>>, vector<16x16xf32>
    %c32 = arith.constant 32 : index
    %c0_5 = arith.constant 0 : index
    %3 = vector.load %arg1[%c32, %c0_5] : memref<236x64xf32, #tpu.memory_space<vmem>>, vector<16x16xf32>
    %c48 = arith.constant 48 : index
    %c0_6 = arith.constant 0 : index
    %4 = vector.load %arg1[%c48, %c0_6] : memref<236x64xf32, #tpu.memory_space<vmem>>, vector<16x16xf32>
    %c64 = arith.constant 64 : index
    %c0_7 = arith.constant 0 : index
    %5 = vector.load %arg1[%c64, %c0_7] : memref<236x64xf32, #tpu.memory_space<vmem>>, vector<16x64xf32>
    %c80 = arith.constant 80 : index
    %c0_8 = arith.constant 0 : index
    %6 = vector.load %arg1[%c80, %c0_8] : memref<236x64xf32, #tpu.memory_space<vmem>>, vector<64x16xf32>
    %c144 = arith.constant 144 : index
    %c0_9 = arith.constant 0 : index
    %7 = vector.load %arg1[%c144, %c0_9] : memref<236x64xf32, #tpu.memory_space<vmem>>, vector<1x16xf32>
    %c145 = arith.constant 145 : index
    %c0_10 = arith.constant 0 : index
    %8 = vector.load %arg1[%c145, %c0_10] : memref<236x64xf32, #tpu.memory_space<vmem>>, vector<1x16xf32>
    %c146 = arith.constant 146 : index
    %c0_11 = arith.constant 0 : index
    %9 = vector.load %arg1[%c146, %c0_11] : memref<236x64xf32, #tpu.memory_space<vmem>>, vector<1x16xf32>
    %c147 = arith.constant 147 : index
    %c0_12 = arith.constant 0 : index
    %10 = vector.load %arg1[%c147, %c0_12] : memref<236x64xf32, #tpu.memory_space<vmem>>, vector<1x16xf32>
    %c148 = arith.constant 148 : index
    %c0_13 = arith.constant 0 : index
    %11 = vector.load %arg1[%c148, %c0_13] : memref<236x64xf32, #tpu.memory_space<vmem>>, vector<1x64xf32>
    %c149 = arith.constant 149 : index
    %c0_14 = arith.constant 0 : index
    %12 = vector.load %arg1[%c149, %c0_14] : memref<236x64xf32, #tpu.memory_space<vmem>>, vector<1x16xf32>
    %c150 = arith.constant 150 : index
    %c0_15 = arith.constant 0 : index
    %13 = vector.load %arg1[%c150, %c0_15] : memref<236x64xf32, #tpu.memory_space<vmem>>, vector<1x16xf32>
    %c151 = arith.constant 151 : index
    %c0_16 = arith.constant 0 : index
    %14 = vector.load %arg1[%c151, %c0_16] : memref<236x64xf32, #tpu.memory_space<vmem>>, vector<1x16xf32>
    %c152 = arith.constant 152 : index
    %c0_17 = arith.constant 0 : index
    %15 = vector.load %arg1[%c152, %c0_17] : memref<236x64xf32, #tpu.memory_space<vmem>>, vector<1x16xf32>
    %c153 = arith.constant 153 : index
    %c0_18 = arith.constant 0 : index
    %16 = vector.load %arg1[%c153, %c0_18] : memref<236x64xf32, #tpu.memory_space<vmem>>, vector<1x16xf32>
    %17 = vector.shape_cast %0 : vector<2x8x16xf32> to vector<16x16xf32>
    %cst = arith.constant dense<0.000000e+00> : vector<16x16xf32>
    %18 = tpu.matmul %17, %1, %cst {dimension_numbers = #tpu.dot_dimension_numbers<[1], [0], [0], [1], [0, 0, 1, 1], [], []>} : vector<16x16xf32>, vector<16x16xf32>, vector<16x16xf32> -> vector<16x16xf32>
    %19 = vector.broadcast %7 : vector<1x16xf32> to vector<16x16xf32>
    %20 = arith.addf %18, %19 : vector<16x16xf32>
    %cst_19 = arith.constant dense<0.000000e+00> : vector<16x16xf32>
    %21 = tpu.matmul %17, %2, %cst_19 {dimension_numbers = #tpu.dot_dimension_numbers<[1], [0], [0], [1], [0, 0, 1, 1], [], []>} : vector<16x16xf32>, vector<16x16xf32>, vector<16x16xf32> -> vector<16x16xf32>
    %22 = vector.broadcast %8 : vector<1x16xf32> to vector<16x16xf32>
    %23 = arith.addf %21, %22 : vector<16x16xf32>
    %cst_20 = arith.constant dense<0.000000e+00> : vector<16x16xf32>
    %24 = tpu.matmul %17, %3, %cst_20 {dimension_numbers = #tpu.dot_dimension_numbers<[1], [0], [0], [1], [0, 0, 1, 1], [], []>} : vector<16x16xf32>, vector<16x16xf32>, vector<16x16xf32> -> vector<16x16xf32>
    %25 = vector.broadcast %9 : vector<1x16xf32> to vector<16x16xf32>
    %26 = arith.addf %24, %25 : vector<16x16xf32>
    "tpu.trace_start"() <{level = 10 : i32, message = "qd,kd->qk"}> : () -> ()
    %cst_21 = arith.constant dense<0.000000e+00> : vector<16x16xf32>
    %27 = tpu.matmul %20, %23, %cst_21 {dimension_numbers = #tpu.dot_dimension_numbers<[1], [1], [0], [0], [0, 0, 1, 0], [], []>} : vector<16x16xf32>, vector<16x16xf32>, vector<16x16xf32> -> vector<16x16xf32>
    "tpu.trace_stop"() : () -> ()
    %cst_22 = arith.constant 2.500000e-01 : f32
    %28 = vector.broadcast %cst_22 : f32 to vector<16x16xf32>
    %29 = arith.mulf %27, %28 : vector<16x16xf32>
    %30 = tpu.iota {dimensions = array<i32: 0>} : vector<2x8x16xi32>
    %31 = vector.shape_cast %30 : vector<2x8x16xi32> to vector<16x16xi32>
    %32 = tpu.iota {dimensions = array<i32: 1>} : vector<16x2x8xi32>
    %33 = vector.shape_cast %32 : vector<16x2x8xi32> to vector<16x16xi32>
    %34 = arith.cmpi eq, %31, %33 : vector<16x16xi32>
    %cst_23 = arith.constant -1.000000e+30 : f32
    %35 = vector.broadcast %cst_23 : f32 to vector<16x16xf32>
    %36 = arith.select %34, %29, %35 : vector<16x16xi1>, vector<16x16xf32>
    %cst_24 = arith.constant dense<0xFF800000> : vector<16xf32>
    %37 = vector.multi_reduction <maximumf>, %36, %cst_24 [1] : vector<16x16xf32> to vector<16xf32>
    %38 = vector.shape_cast %37 : vector<16xf32> to vector<16x1xf32>
    %39 = vector.broadcast %38 : vector<16x1xf32> to vector<16x16xf32>
    %40 = arith.subf %36, %39 : vector<16x16xf32>
    %41 = math.exp %40 : vector<16x16xf32>
    %cst_25 = arith.constant dense<0.000000e+00> : vector<16xf32>
    %42 = vector.multi_reduction <add>, %41, %cst_25 [1] : vector<16x16xf32> to vector<16xf32>
    %43 = vector.shape_cast %42 : vector<16xf32> to vector<16x1xf32>
    %44 = vector.broadcast %43 : vector<16x1xf32> to vector<16x16xf32>
    %45 = arith.divf %41, %44 : vector<16x16xf32>
    %cst_26 = arith.constant dense<0.000000e+00> : vector<16x16xf32>
    %46 = tpu.matmul %45, %26, %cst_26 {dimension_numbers = #tpu.dot_dimension_numbers<[1], [0], [0], [1], [0, 0, 1, 1], [], []>} : vector<16x16xf32>, vector<16x16xf32>, vector<16x16xf32> -> vector<16x16xf32>
    %cst_27 = arith.constant dense<0.000000e+00> : vector<16x16xf32>
    %47 = tpu.matmul %46, %4, %cst_27 {dimension_numbers = #tpu.dot_dimension_numbers<[1], [0], [0], [1], [0, 0, 1, 1], [], []>} : vector<16x16xf32>, vector<16x16xf32>, vector<16x16xf32> -> vector<16x16xf32>
    %48 = vector.broadcast %10 : vector<1x16xf32> to vector<16x16xf32>
    %49 = arith.addf %47, %48 : vector<16x16xf32>
    %50 = arith.addf %17, %49 : vector<16x16xf32>
    %cst_28 = arith.constant dense<0.000000e+00> : vector<16xf32>
    %51 = vector.multi_reduction <add>, %50, %cst_28 [1] : vector<16x16xf32> to vector<16xf32>
    %52 = vector.shape_cast %51 : vector<16xf32> to vector<16x1xf32>
    %cst_29 = arith.constant 1.600000e+01 : f32
    %53 = vector.broadcast %cst_29 : f32 to vector<16x1xf32>
    %54 = arith.divf %52, %53 : vector<16x1xf32>
    %55 = vector.broadcast %54 : vector<16x1xf32> to vector<16x16xf32>
    %56 = arith.subf %50, %55 : vector<16x16xf32>
    %57 = arith.mulf %56, %56 : vector<16x16xf32>
    %cst_30 = arith.constant dense<0.000000e+00> : vector<16xf32>
    %58 = vector.multi_reduction <add>, %57, %cst_30 [1] : vector<16x16xf32> to vector<16xf32>
    %59 = vector.shape_cast %58 : vector<16xf32> to vector<16x1xf32>
    %cst_31 = arith.constant 1.600000e+01 : f32
    %60 = vector.broadcast %cst_31 : f32 to vector<16x1xf32>
    %61 = arith.divf %59, %60 : vector<16x1xf32>
    %62 = vector.broadcast %54 : vector<16x1xf32> to vector<16x16xf32>
    %63 = arith.subf %50, %62 : vector<16x16xf32>
    %cst_32 = arith.constant 9.99999974E-6 : f32
    %64 = vector.broadcast %cst_32 : f32 to vector<16x1xf32>
    %65 = arith.addf %61, %64 : vector<16x1xf32>
    %66 = math.rsqrt %65 : vector<16x1xf32>
    %67 = vector.broadcast %66 : vector<16x1xf32> to vector<16x16xf32>
    %68 = arith.mulf %63, %67 : vector<16x16xf32>
    %69 = vector.broadcast %13 : vector<1x16xf32> to vector<16x16xf32>
    %70 = arith.mulf %68, %69 : vector<16x16xf32>
    %71 = vector.broadcast %14 : vector<1x16xf32> to vector<16x16xf32>
    %72 = arith.addf %70, %71 : vector<16x16xf32>
    %cst_33 = arith.constant dense<0.000000e+00> : vector<16x64xf32>
    %73 = tpu.matmul %72, %5, %cst_33 {dimension_numbers = #tpu.dot_dimension_numbers<[1], [0], [0], [1], [0, 0, 1, 1], [], []>} : vector<16x16xf32>, vector<16x64xf32>, vector<16x64xf32> -> vector<16x64xf32>
    %74 = vector.broadcast %11 : vector<1x64xf32> to vector<16x64xf32>
    %75 = arith.addf %73, %74 : vector<16x64xf32>
    %cst_34 = arith.constant 0.000000e+00 : f32
    %76 = vector.broadcast %cst_34 : f32 to vector<16x64xf32>
    %77 = arith.maximumf %75, %76 : vector<16x64xf32>
    %cst_35 = arith.constant dense<0.000000e+00> : vector<16x16xf32>
    %78 = tpu.matmul %77, %6, %cst_35 {dimension_numbers = #tpu.dot_dimension_numbers<[1], [0], [0], [1], [0, 0, 1, 1], [], []>} : vector<16x64xf32>, vector<64x16xf32>, vector<16x16xf32> -> vector<16x16xf32>
    %79 = vector.broadcast %12 : vector<1x16xf32> to vector<16x16xf32>
    %80 = arith.addf %78, %79 : vector<16x16xf32>
    %81 = arith.addf %72, %80 : vector<16x16xf32>
    %cst_36 = arith.constant dense<0.000000e+00> : vector<16xf32>
    %82 = vector.multi_reduction <add>, %81, %cst_36 [1] : vector<16x16xf32> to vector<16xf32>
    %83 = vector.shape_cast %82 : vector<16xf32> to vector<16x1xf32>
    %cst_37 = arith.constant 1.600000e+01 : f32
    %84 = vector.broadcast %cst_37 : f32 to vector<16x1xf32>
    %85 = arith.divf %83, %84 : vector<16x1xf32>
    %86 = vector.broadcast %85 : vector<16x1xf32> to vector<16x16xf32>
    %87 = arith.subf %81, %86 : vector<16x16xf32>
    %88 = arith.mulf %87, %87 : vector<16x16xf32>
    %cst_38 = arith.constant dense<0.000000e+00> : vector<16xf32>
    %89 = vector.multi_reduction <add>, %88, %cst_38 [1] : vector<16x16xf32> to vector<16xf32>
    %90 = vector.shape_cast %89 : vector<16xf32> to vector<16x1xf32>
    %cst_39 = arith.constant 1.600000e+01 : f32
    %91 = vector.broadcast %cst_39 : f32 to vector<16x1xf32>
    %92 = arith.divf %90, %91 : vector<16x1xf32>
    %93 = vector.broadcast %85 : vector<16x1xf32> to vector<16x16xf32>
    %94 = arith.subf %81, %93 : vector<16x16xf32>
    %cst_40 = arith.constant 9.99999974E-6 : f32
    %95 = vector.broadcast %cst_40 : f32 to vector<16x1xf32>
    %96 = arith.addf %92, %95 : vector<16x1xf32>
    %97 = math.rsqrt %96 : vector<16x1xf32>
    %98 = vector.broadcast %97 : vector<16x1xf32> to vector<16x16xf32>
    %99 = arith.mulf %94, %98 : vector<16x16xf32>
    %100 = vector.broadcast %15 : vector<1x16xf32> to vector<16x16xf32>
    %101 = arith.mulf %99, %100 : vector<16x16xf32>
    %102 = vector.broadcast %16 : vector<1x16xf32> to vector<16x16xf32>
    %103 = arith.addf %101, %102 : vector<16x16xf32>
    %104 = vector.shape_cast %103 : vector<16x16xf32> to vector<2x8x16xf32>
    %105 = tpu.transpose %104, [0, 2, 1] : vector<2x8x16xf32> -> vector<2x16x8xf32>
    %c154 = arith.constant 154 : index
    %c0_41 = arith.constant 0 : index
    %106 = vector.load %arg1[%c154, %c0_41] : memref<236x64xf32, #tpu.memory_space<vmem>>, vector<8x8xf32>
    %c162 = arith.constant 162 : index
    %c0_42 = arith.constant 0 : index
    %107 = vector.load %arg1[%c162, %c0_42] : memref<236x64xf32, #tpu.memory_space<vmem>>, vector<8x8xf32>
    %c170 = arith.constant 170 : index
    %c0_43 = arith.constant 0 : index
    %108 = vector.load %arg1[%c170, %c0_43] : memref<236x64xf32, #tpu.memory_space<vmem>>, vector<8x8xf32>
    %c178 = arith.constant 178 : index
    %c0_44 = arith.constant 0 : index
    %109 = vector.load %arg1[%c178, %c0_44] : memref<236x64xf32, #tpu.memory_space<vmem>>, vector<8x8xf32>
    %c186 = arith.constant 186 : index
    %c0_45 = arith.constant 0 : index
    %110 = vector.load %arg1[%c186, %c0_45] : memref<236x64xf32, #tpu.memory_space<vmem>>, vector<8x32xf32>
    %c194 = arith.constant 194 : index
    %c0_46 = arith.constant 0 : index
    %111 = vector.load %arg1[%c194, %c0_46] : memref<236x64xf32, #tpu.memory_space<vmem>>, vector<32x8xf32>
    %c226 = arith.constant 226 : index
    %c0_47 = arith.constant 0 : index
    %112 = vector.load %arg1[%c226, %c0_47] : memref<236x64xf32, #tpu.memory_space<vmem>>, vector<1x8xf32>
    %c227 = arith.constant 227 : index
    %c0_48 = arith.constant 0 : index
    %113 = vector.load %arg1[%c227, %c0_48] : memref<236x64xf32, #tpu.memory_space<vmem>>, vector<1x8xf32>
    %c228 = arith.constant 228 : index
    %c0_49 = arith.constant 0 : index
    %114 = vector.load %arg1[%c228, %c0_49] : memref<236x64xf32, #tpu.memory_space<vmem>>, vector<1x8xf32>
    %c229 = arith.constant 229 : index
    %c0_50 = arith.constant 0 : index
    %115 = vector.load %arg1[%c229, %c0_50] : memref<236x64xf32, #tpu.memory_space<vmem>>, vector<1x8xf32>
    %c230 = arith.constant 230 : index
    %c0_51 = arith.constant 0 : index
    %116 = vector.load %arg1[%c230, %c0_51] : memref<236x64xf32, #tpu.memory_space<vmem>>, vector<1x32xf32>
    %c231 = arith.constant 231 : index
    %c0_52 = arith.constant 0 : index
    %117 = vector.load %arg1[%c231, %c0_52] : memref<236x64xf32, #tpu.memory_space<vmem>>, vector<1x8xf32>
    %c232 = arith.constant 232 : index
    %c0_53 = arith.constant 0 : index
    %118 = vector.load %arg1[%c232, %c0_53] : memref<236x64xf32, #tpu.memory_space<vmem>>, vector<1x8xf32>
    %c233 = arith.constant 233 : index
    %c0_54 = arith.constant 0 : index
    %119 = vector.load %arg1[%c233, %c0_54] : memref<236x64xf32, #tpu.memory_space<vmem>>, vector<1x8xf32>
    %c234 = arith.constant 234 : index
    %c0_55 = arith.constant 0 : index
    %120 = vector.load %arg1[%c234, %c0_55] : memref<236x64xf32, #tpu.memory_space<vmem>>, vector<1x8xf32>
    %c235 = arith.constant 235 : index
    %c0_56 = arith.constant 0 : index
    %121 = vector.load %arg1[%c235, %c0_56] : memref<236x64xf32, #tpu.memory_space<vmem>>, vector<1x8xf32>
    %122 = vector.shape_cast %105 : vector<2x16x8xf32> to vector<32x8xf32>
    %cst_57 = arith.constant dense<0.000000e+00> : vector<32x8xf32>
    %123 = tpu.matmul %122, %106, %cst_57 {dimension_numbers = #tpu.dot_dimension_numbers<[1], [0], [0], [1], [0, 0, 1, 1], [], []>} : vector<32x8xf32>, vector<8x8xf32>, vector<32x8xf32> -> vector<32x8xf32>
    %124 = vector.broadcast %112 : vector<1x8xf32> to vector<32x8xf32>
    %125 = arith.addf %123, %124 : vector<32x8xf32>
    %cst_58 = arith.constant dense<0.000000e+00> : vector<32x8xf32>
    %126 = tpu.matmul %122, %107, %cst_58 {dimension_numbers = #tpu.dot_dimension_numbers<[1], [0], [0], [1], [0, 0, 1, 1], [], []>} : vector<32x8xf32>, vector<8x8xf32>, vector<32x8xf32> -> vector<32x8xf32>
    %127 = vector.broadcast %113 : vector<1x8xf32> to vector<32x8xf32>
    %128 = arith.addf %126, %127 : vector<32x8xf32>
    %cst_59 = arith.constant dense<0.000000e+00> : vector<32x8xf32>
    %129 = tpu.matmul %122, %108, %cst_59 {dimension_numbers = #tpu.dot_dimension_numbers<[1], [0], [0], [1], [0, 0, 1, 1], [], []>} : vector<32x8xf32>, vector<8x8xf32>, vector<32x8xf32> -> vector<32x8xf32>
    %130 = vector.broadcast %114 : vector<1x8xf32> to vector<32x8xf32>
    %131 = arith.addf %129, %130 : vector<32x8xf32>
    "tpu.trace_start"() <{level = 10 : i32, message = "qd,kd->qk"}> : () -> ()
    %cst_60 = arith.constant dense<0.000000e+00> : vector<32x32xf32>
    %132 = tpu.matmul %125, %128, %cst_60 {dimension_numbers = #tpu.dot_dimension_numbers<[1], [1], [0], [0], [0, 0, 1, 0], [], []>} : vector<32x8xf32>, vector<32x8xf32>, vector<32x32xf32> -> vector<32x32xf32>
    "tpu.trace_stop"() : () -> ()
    %cst_61 = arith.constant 0.353553385 : f32
    %133 = vector.broadcast %cst_61 : f32 to vector<32x32xf32>
    %134 = arith.mulf %132, %133 : vector<32x32xf32>
    %135 = tpu.iota {dimensions = array<i32: 0>} : vector<2x16x32xi32>
    %136 = vector.shape_cast %135 : vector<2x16x32xi32> to vector<32x32xi32>
    %137 = tpu.iota {dimensions = array<i32: 1>} : vector<32x2x16xi32>
    %138 = vector.shape_cast %137 : vector<32x2x16xi32> to vector<32x32xi32>
    %139 = arith.cmpi eq, %136, %138 : vector<32x32xi32>
    %cst_62 = arith.constant -1.000000e+30 : f32
    %140 = vector.broadcast %cst_62 : f32 to vector<32x32xf32>
    %141 = arith.select %139, %134, %140 : vector<32x32xi1>, vector<32x32xf32>
    %cst_63 = arith.constant dense<0xFF800000> : vector<32xf32>
    %142 = vector.multi_reduction <maximumf>, %141, %cst_63 [1] : vector<32x32xf32> to vector<32xf32>
    %143 = vector.shape_cast %142 : vector<32xf32> to vector<32x1xf32>
    %144 = vector.broadcast %143 : vector<32x1xf32> to vector<32x32xf32>
    %145 = arith.subf %141, %144 : vector<32x32xf32>
    %146 = math.exp %145 : vector<32x32xf32>
    %cst_64 = arith.constant dense<0.000000e+00> : vector<32xf32>
    %147 = vector.multi_reduction <add>, %146, %cst_64 [1] : vector<32x32xf32> to vector<32xf32>
    %148 = vector.shape_cast %147 : vector<32xf32> to vector<32x1xf32>
    %149 = vector.broadcast %148 : vector<32x1xf32> to vector<32x32xf32>
    %150 = arith.divf %146, %149 : vector<32x32xf32>
    %cst_65 = arith.constant dense<0.000000e+00> : vector<32x8xf32>
    %151 = tpu.matmul %150, %131, %cst_65 {dimension_numbers = #tpu.dot_dimension_numbers<[1], [0], [0], [1], [0, 0, 1, 1], [], []>} : vector<32x32xf32>, vector<32x8xf32>, vector<32x8xf32> -> vector<32x8xf32>
    %cst_66 = arith.constant dense<0.000000e+00> : vector<32x8xf32>
    %152 = tpu.matmul %151, %109, %cst_66 {dimension_numbers = #tpu.dot_dimension_numbers<[1], [0], [0], [1], [0, 0, 1, 1], [], []>} : vector<32x8xf32>, vector<8x8xf32>, vector<32x8xf32> -> vector<32x8xf32>
    %153 = vector.broadcast %115 : vector<1x8xf32> to vector<32x8xf32>
    %154 = arith.addf %152, %153 : vector<32x8xf32>
    %155 = arith.addf %122, %154 : vector<32x8xf32>
    %cst_67 = arith.constant dense<0.000000e+00> : vector<32xf32>
    %156 = vector.multi_reduction <add>, %155, %cst_67 [1] : vector<32x8xf32> to vector<32xf32>
    %157 = vector.shape_cast %156 : vector<32xf32> to vector<32x1xf32>
    %cst_68 = arith.constant 8.000000e+00 : f32
    %158 = vector.broadcast %cst_68 : f32 to vector<32x1xf32>
    %159 = arith.divf %157, %158 : vector<32x1xf32>
    %160 = vector.broadcast %159 : vector<32x1xf32> to vector<32x8xf32>
    %161 = arith.subf %155, %160 : vector<32x8xf32>
    %162 = arith.mulf %161, %161 : vector<32x8xf32>
    %cst_69 = arith.constant dense<0.000000e+00> : vector<32xf32>
    %163 = vector.multi_reduction <add>, %162, %cst_69 [1] : vector<32x8xf32> to vector<32xf32>
    %164 = vector.shape_cast %163 : vector<32xf32> to vector<32x1xf32>
    %cst_70 = arith.constant 8.000000e+00 : f32
    %165 = vector.broadcast %cst_70 : f32 to vector<32x1xf32>
    %166 = arith.divf %164, %165 : vector<32x1xf32>
    %167 = vector.broadcast %159 : vector<32x1xf32> to vector<32x8xf32>
    %168 = arith.subf %155, %167 : vector<32x8xf32>
    %cst_71 = arith.constant 9.99999974E-6 : f32
    %169 = vector.broadcast %cst_71 : f32 to vector<32x1xf32>
    %170 = arith.addf %166, %169 : vector<32x1xf32>
    %171 = math.rsqrt %170 : vector<32x1xf32>
    %172 = vector.broadcast %171 : vector<32x1xf32> to vector<32x8xf32>
    %173 = arith.mulf %168, %172 : vector<32x8xf32>
    %174 = vector.broadcast %118 : vector<1x8xf32> to vector<32x8xf32>
    %175 = arith.mulf %173, %174 : vector<32x8xf32>
    %176 = vector.broadcast %119 : vector<1x8xf32> to vector<32x8xf32>
    %177 = arith.addf %175, %176 : vector<32x8xf32>
    %cst_72 = arith.constant dense<0.000000e+00> : vector<32x32xf32>
    %178 = tpu.matmul %177, %110, %cst_72 {dimension_numbers = #tpu.dot_dimension_numbers<[1], [0], [0], [1], [0, 0, 1, 1], [], []>} : vector<32x8xf32>, vector<8x32xf32>, vector<32x32xf32> -> vector<32x32xf32>
    %179 = vector.broadcast %116 : vector<1x32xf32> to vector<32x32xf32>
    %180 = arith.addf %178, %179 : vector<32x32xf32>
    %cst_73 = arith.constant 0.000000e+00 : f32
    %181 = vector.broadcast %cst_73 : f32 to vector<32x32xf32>
    %182 = arith.maximumf %180, %181 : vector<32x32xf32>
    %cst_74 = arith.constant dense<0.000000e+00> : vector<32x8xf32>
    %183 = tpu.matmul %182, %111, %cst_74 {dimension_numbers = #tpu.dot_dimension_numbers<[1], [0], [0], [1], [0, 0, 1, 1], [], []>} : vector<32x32xf32>, vector<32x8xf32>, vector<32x8xf32> -> vector<32x8xf32>
    %184 = vector.broadcast %117 : vector<1x8xf32> to vector<32x8xf32>
    %185 = arith.addf %183, %184 : vector<32x8xf32>
    %186 = arith.addf %177, %185 : vector<32x8xf32>
    %cst_75 = arith.constant dense<0.000000e+00> : vector<32xf32>
    %187 = vector.multi_reduction <add>, %186, %cst_75 [1] : vector<32x8xf32> to vector<32xf32>
    %188 = vector.shape_cast %187 : vector<32xf32> to vector<32x1xf32>
    %cst_76 = arith.constant 8.000000e+00 : f32
    %189 = vector.broadcast %cst_76 : f32 to vector<32x1xf32>
    %190 = arith.divf %188, %189 : vector<32x1xf32>
    %191 = vector.broadcast %190 : vector<32x1xf32> to vector<32x8xf32>
    %192 = arith.subf %186, %191 : vector<32x8xf32>
    %193 = arith.mulf %192, %192 : vector<32x8xf32>
    %cst_77 = arith.constant dense<0.000000e+00> : vector<32xf32>
    %194 = vector.multi_reduction <add>, %193, %cst_77 [1] : vector<32x8xf32> to vector<32xf32>
    %195 = vector.shape_cast %194 : vector<32xf32> to vector<32x1xf32>
    %cst_78 = arith.constant 8.000000e+00 : f32
    %196 = vector.broadcast %cst_78 : f32 to vector<32x1xf32>
    %197 = arith.divf %195, %196 : vector<32x1xf32>
    %198 = vector.broadcast %190 : vector<32x1xf32> to vector<32x8xf32>
    %199 = arith.subf %186, %198 : vector<32x8xf32>
    %cst_79 = arith.constant 9.99999974E-6 : f32
    %200 = vector.broadcast %cst_79 : f32 to vector<32x1xf32>
    %201 = arith.addf %197, %200 : vector<32x1xf32>
    %202 = math.rsqrt %201 : vector<32x1xf32>
    %203 = vector.broadcast %202 : vector<32x1xf32> to vector<32x8xf32>
    %204 = arith.mulf %199, %203 : vector<32x8xf32>
    %205 = vector.broadcast %120 : vector<1x8xf32> to vector<32x8xf32>
    %206 = arith.mulf %204, %205 : vector<32x8xf32>
    %207 = vector.broadcast %121 : vector<1x8xf32> to vector<32x8xf32>
    %208 = arith.addf %206, %207 : vector<32x8xf32>
    %209 = vector.shape_cast %208 : vector<32x8xf32> to vector<2x16x8xf32>
    %210 = tpu.transpose %209, [0, 2, 1] : vector<2x16x8xf32> -> vector<2x8x16xf32>
    %cst_80 = arith.constant dense<0xFF800000> : vector<2x8xf32>
    %211 = vector.multi_reduction <maximumf>, %210, %cst_80 [2] : vector<2x8x16xf32> to vector<2x8xf32>
    %212 = vector.shape_cast %211 : vector<2x8xf32> to vector<2x8x1xf32>
    %213 = vector.broadcast %212 : vector<2x8x1xf32> to vector<2x8x16xf32>
    %214 = arith.subf %210, %213 : vector<2x8x16xf32>
    %215 = math.exp %214 : vector<2x8x16xf32>
    %cst_81 = arith.constant dense<0.000000e+00> : vector<2x8xf32>
    %216 = vector.multi_reduction <add>, %215, %cst_81 [2] : vector<2x8x16xf32> to vector<2x8xf32>
    %217 = vector.shape_cast %216 : vector<2x8xf32> to vector<2x8x1xf32>
    %218 = vector.broadcast %217 : vector<2x8x1xf32> to vector<2x8x16xf32>
    %219 = arith.divf %215, %218 : vector<2x8x16xf32>
    %c0_82 = arith.constant 0 : index
    %c0_83 = arith.constant 0 : index
    %c0_84 = arith.constant 0 : index
    %220 = vector.load %arg2[%c0_82, %c0_83, %c0_84] : memref<2x8x16xf32, #tpu.memory_space<vmem>>, vector<2x8x16xf32>
    tpu.vector_store %arg2[%c0_82, %c0_83, %c0_84], %219 {strides = array<i32>} : memref<2x8x16xf32, #tpu.memory_space<vmem>>, vector<2x8x16xf32>,
    return
  }
}

</mosaic_0001>

<llo_original>
// kernel: my_tr_model_forward.1
$region0: #{my_tr_model_forward.1}
  #allocation0 [shape = 'u32[]', space=smem, size = 0x4, offset = 0x4, fixed_abs, tag = 'smem constant byte address 0x4 - core index']
  #allocation1 [shape = 'u32[144,128]{1,0:T(1,128)}', space=vmem, size = 0x12000, scoped, tag = 'internal scratch']
  %s0 = inlined_call_operand.vmem [shape: f32[2,8,16], index: 0, kind: input, shape index: {}]
  %s1 = inlined_call_operand.vmem [shape: f32[236,64], index: 1, kind: input, shape index: {}]
  %s2 = inlined_call_operand.hbm [shape: f32[2,8,16], index: 2, kind: output, shape index: {}]
  %s3 = sld [smem:[#allocation0]]
  $region18: #{my_tr_model_forward.1} parent=0
    _
  %s5 = ssub.s32 1, %s3
  %s6 = scalar_select 0, %s5, %s3
  $region1: #{my_tr_model_forward.1} parent=0
    #allocation2 [shape = 'u8[8192]{0}', space=vmem, size = 0x2000, scoped, tag = 'output window, operand 0, single buffered']
    #allocation3 [shape = 's32[1]{0}', space=sflag, size = 0x4, scoped, tag = 'scoped memory for my_tr_model_forward.1']
    %7 = vsyncpa [#allocation3], 0
    // Predicated region
    $region2: #{my_tr_model_forward.1} parent=1 // pred_check
      _
    $region3: #{my_tr_model_forward.1} parent=1 // pred_check_branch
      %9 = sbr.rel (0) target = $region5
    $region4: #{my_tr_model_forward.1} parent=1 // pred_region
      _
    $region5: #{my_tr_model_forward.1} parent=1 // pred_fallthru
      _
    // Predicated region
    $region6: #{my_tr_model_forward.1} parent=1 // pred_check
      _
    $region7: #{my_tr_model_forward.1} parent=1 // pred_check_branch
      %11 = sbr.rel (0) target = $region9
    $region8: #{my_tr_model_forward.1} parent=1 // pred_region
      _
    $region9: #{my_tr_model_forward.1} parent=1 // pred_fallthru
      _
    %v12 = vld [vmem:[%s0] sm:$0xff]
    %v13 = vld [vmem:[%s0 + $0x8] sm:$0xff]
    %v14 = vld [vmem:[%s1] sm:$0xff]
    %v15 = vld [vmem:[%s1 + $0x8] sm:$0xff]
    %v16 = vld [vmem:[%s1 + $0x10] sm:$0xff]
    %v17 = vld [vmem:[%s1 + $0x18] sm:$0xff]
    %v18 = vld [vmem:[%s1 + $0x20] sm:$0xff]
    %v19 = vld [vmem:[%s1 + $0x28] sm:$0xff]
    %v20 = vld [vmem:[%s1 + $0x30] sm:$0xff]
    %v21 = vld [vmem:[%s1 + $0x38] sm:$0xff]
    %v22 = vld [vmem:[%s1 + $0x40] sm:$0xff]
    %v23 = vld [vmem:[%s1 + $0x48] sm:$0xff]
    %v24 = vld [vmem:[%s1 + $0x50] sm:$0xff]
    %v25 = vld [vmem:[%s1 + $0x58] sm:$0xff]
    %v26 = vld [vmem:[%s1 + $0x60] sm:$0xff]
    %v27 = vld [vmem:[%s1 + $0x68] sm:$0xff]
    %v28 = vld [vmem:[%s1 + $0x70] sm:$0xff]
    %v29 = vld [vmem:[%s1 + $0x78] sm:$0xff]
    %v30 = vld [vmem:[%s1 + $0x80] sm:$0xff]
    %v31 = vld [vmem:[%s1 + $0x88] sm:$0xff]
    %v32 = vld [vmem:[%s1 + $0x90] sm:$0x1]
    %v33 = vld [vmem:[%s1 + $0x91] sm:$0x1]
    %v34 = vld [vmem:[%s1 + $0x92] sm:$0x1]
    %v35 = vld [vmem:[%s1 + $0x93] sm:$0x1]
    %v36 = vld [vmem:[%s1 + $0x94] sm:$0x1]
    %v37 = vld [vmem:[%s1 + $0x95] sm:$0x1]
    %v38 = vld [vmem:[%s1 + $0x96] sm:$0x1]
    %v39 = vld [vmem:[%s1 + $0x97] sm:$0x1]
    %v40 = vld [vmem:[%s1 + $0x98] sm:$0x1]
    %v41 = vld [vmem:[%s1 + $0x99] sm:$0x1]
    %v42 = vlaneseq
    %v43 = vshrl.u32 %v42, 7
    %v44 = vsub.s32 0, %v43
    %v45 = vrot.slane %v32, %v44
    %vm46 = vcmask 130048
    %v48 = vsel %vm46, %v12, 0
    %v51 = vsel %vm46, %v13, 0
    %53 = vmatprep.subr.mxu0 0.0
    %54 = vmatpush1.msra.mxu0 0.0
    %55 = vmatprep.subr.mxu0 0.0
    %56 = vmatpush1.msra.mxu0 0.0
    %57 = vmatprep.subr.mxu0 0.0
    %58 = vmatpush1.msra.mxu0 0.0
    %59 = vmatprep.subr.mxu0 0.0
    %60 = vmatpush1.msra.mxu0 0.0
    %61 = vmatprep.subr.mxu0 0.0
    %62 = vmatpush1.msra.mxu0 0.0
    %63 = vmatprep.subr.mxu0 0.0
    %64 = vmatpush1.msra.mxu0 0.0
    %65 = vmatprep.subr.mxu0 0.0
    %66 = vmatpush1.msra.mxu0 0.0
    %67 = vmatprep.subr.mxu0 0.0
    %68 = vmatpush1.msra.mxu0 0.0
    %69 = vmatprep.subr.mxu0 0.0
    %70 = vmatpush1.msra.mxu0 0.0
    %71 = vmatprep.subr.mxu0 0.0
    %72 = vmatpush1.msra.mxu0 0.0
    %73 = vmatprep.subr.mxu0 0.0
    %74 = vmatpush1.msra.mxu0 0.0
    %75 = vmatprep.subr.mxu0 0.0
    %76 = vmatpush1.msra.mxu0 0.0
    %77 = vmatprep.subr.mxu0 0.0
    %78 = vmatpush1.msra.mxu0 0.0
    %79 = vmatprep.subr.mxu0 0.0
    %80 = vmatpush1.msra.mxu0 0.0
    %81 = vmatprep.subr.mxu0 0.0
    %82 = vmatpush1.msra.mxu0 %v15
    %83 = vmatprep.subr.mxu0 0.0
    %84 = vmatpush1.msra.mxu0 %v14
    %85 = vmatprep.subr.mxu0 0.0
    %86 = vmatpush2.msra.mxu0 0.0
    %87 = vmatprep.subr.mxu0 0.0
    %88 = vmatpush2.msra.mxu0 0.0
    %89 = vmatprep.subr.mxu0 0.0
    %90 = vmatpush2.msra.mxu0 0.0
    %91 = vmatprep.subr.mxu0 0.0
    %92 = vmatpush2.msra.mxu0 0.0
    %93 = vmatprep.subr.mxu0 0.0
    %94 = vmatpush2.msra.mxu0 0.0
    %95 = vmatprep.subr.mxu0 0.0
    %96 = vmatpush2.msra.mxu0 0.0
    %97 = vmatprep.subr.mxu0 0.0
    %98 = vmatpush2.msra.mxu0 0.0
    %99 = vmatprep.subr.mxu0 0.0
    %100 = vmatpush2.msra.mxu0 0.0
    %101 = vmatprep.subr.mxu0 0.0
    %102 = vmatpush2.msra.mxu0 0.0
    %103 = vmatprep.subr.mxu0 0.0
    %104 = vmatpush2.msra.mxu0 0.0
    %105 = vmatprep.subr.mxu0 0.0
    %106 = vmatpush2.msra.mxu0 0.0
    %107 = vmatprep.subr.mxu0 0.0
    %108 = vmatpush2.msra.mxu0 0.0
    %109 = vmatprep.subr.mxu0 0.0
    %110 = vmatpush2.msra.mxu0 0.0
    %111 = vmatprep.subr.mxu0 0.0
    %112 = vmatpush2.msra.mxu0 0.0
    %113 = vmatprep.subr.mxu0 0.0
    %114 = vmatpush2.msra.mxu0 0.0
    %115 = vmatprep.subr.mxu0 0.0
    %116 = vmatpush2.msra.mxu0 0.0
    %117 = vmatprep.mubr.f32.mxu0 0.0
    %118 = vmatmul.mubr.f32.gmra.mxu0 %v48
    %v119 = vpop.f32.mrf.mxu0
    %v120 = vadd.f32 %v45, %v119
    %v121 = vpop.f32.mrf.mxu0
    %122 = vmatprep.mubr.f32.mxu0 0.0
    %123 = vmatmul.mubr.f32.gmra.mxu0 %v51
    %v124 = vpop.f32.mrf.mxu0
    %v125 = vadd.f32 %v45, %v124
    %v126 = vpop.f32.mrf.mxu0
    %127 = vdwg.mxu0
    %v128 = vlaneseq
    %v129 = vshrl.u32 %v128, 7
    %v130 = vsub.s32 0, %v129
    %v131 = vrot.slane %v33, %v130
    %132 = vmatprep.subr.mxu0 0.0
    %133 = vmatpush1.msra.mxu0 0.0
    %134 = vmatprep.subr.mxu0 0.0
    %135 = vmatpush1.msra.mxu0 0.0
    %136 = vmatprep.subr.mxu0 0.0
    %137 = vmatpush1.msra.mxu0 0.0
    %138 = vmatprep.subr.mxu0 0.0
    %139 = vmatpush1.msra.mxu0 0.0
    %140 = vmatprep.subr.mxu0 0.0
    %141 = vmatpush1.msra.mxu0 0.0
    %142 = vmatprep.subr.mxu0 0.0
    %143 = vmatpush1.msra.mxu0 0.0
    %144 = vmatprep.subr.mxu0 0.0
    %145 = vmatpush1.msra.mxu0 0.0
    %146 = vmatprep.subr.mxu0 0.0
    %147 = vmatpush1.msra.mxu0 0.0
    %148 = vmatprep.subr.mxu0 0.0
    %149 = vmatpush1.msra.mxu0 0.0
    %150 = vmatprep.subr.mxu0 0.0
    %151 = vmatpush1.msra.mxu0 0.0
    %152 = vmatprep.subr.mxu0 0.0
    %153 = vmatpush1.msra.mxu0 0.0
    %154 = vmatprep.subr.mxu0 0.0
    %155 = vmatpush1.msra.mxu0 0.0
    %156 = vmatprep.subr.mxu0 0.0
    %157 = vmatpush1.msra.mxu0 0.0
    %158 = vmatprep.subr.mxu0 0.0
    %159 = vmatpush1.msra.mxu0 0.0
    %160 = vmatprep.subr.mxu0 0.0
    %161 = vmatpush1.msra.mxu0 %v17
    %162 = vmatprep.subr.mxu0 0.0
    %163 = vmatpush1.msra.mxu0 %v16
    %164 = vmatprep.subr.mxu0 0.0
    %165 = vmatpush2.msra.mxu0 0.0
    %166 = vmatprep.subr.mxu0 0.0
    %167 = vmatpush2.msra.mxu0 0.0
    %168 = vmatprep.subr.mxu0 0.0
    %169 = vmatpush2.msra.mxu0 0.0
    %170 = vmatprep.subr.mxu0 0.0
    %171 = vmatpush2.msra.mxu0 0.0
    %172 = vmatprep.subr.mxu0 0.0
    %173 = vmatpush2.msra.mxu0 0.0
    %174 = vmatprep.subr.mxu0 0.0
    %175 = vmatpush2.msra.mxu0 0.0
    %176 = vmatprep.subr.mxu0 0.0
    %177 = vmatpush2.msra.mxu0 0.0
    %178 = vmatprep.subr.mxu0 0.0
    %179 = vmatpush2.msra.mxu0 0.0
    %180 = vmatprep.subr.mxu0 0.0
    %181 = vmatpush2.msra.mxu0 0.0
    %182 = vmatprep.subr.mxu0 0.0
    %183 = vmatpush2.msra.mxu0 0.0
    %184 = vmatprep.subr.mxu0 0.0
    %185 = vmatpush2.msra.mxu0 0.0
    %186 = vmatprep.subr.mxu0 0.0
    %187 = vmatpush2.msra.mxu0 0.0
    %188 = vmatprep.subr.mxu0 0.0
    %189 = vmatpush2.msra.mxu0 0.0
    %190 = vmatprep.subr.mxu0 0.0
    %191 = vmatpush2.msra.mxu0 0.0
    %192 = vmatprep.subr.mxu0 0.0
    %193 = vmatpush2.msra.mxu0 0.0
    %194 = vmatprep.subr.mxu0 0.0
    %195 = vmatpush2.msra.mxu0 0.0
    %196 = vmatprep.mubr.f32.mxu0 0.0
    %197 = vmatmul.mubr.f32.gmra.mxu0 %v48
    %v198 = vpop.f32.mrf.mxu0
    %v199 = vadd.f32 %v131, %v198
    %v200 = vpop.f32.mrf.mxu0
    %201 = vmatprep.mubr.f32.mxu0 0.0
    %202 = vmatmul.mubr.f32.gmra.mxu0 %v51
    %v203 = vpop.f32.mrf.mxu0
    %v204 = vadd.f32 %v131, %v203
    %v205 = vpop.f32.mrf.mxu0
    %206 = vdwg.mxu0
    %v207 = vlaneseq
    %v208 = vshrl.u32 %v207, 7
    %v209 = vsub.s32 0, %v208
    %v210 = vrot.slane %v34, %v209
    %211 = vmatprep.subr.mxu0 0.0
    %212 = vmatpush1.msra.mxu0 0.0
    %213 = vmatprep.subr.mxu0 0.0
    %214 = vmatpush1.msra.mxu0 0.0
    %215 = vmatprep.subr.mxu0 0.0
    %216 = vmatpush1.msra.mxu0 0.0
    %217 = vmatprep.subr.mxu0 0.0
    %218 = vmatpush1.msra.mxu0 0.0
    %219 = vmatprep.subr.mxu0 0.0
    %220 = vmatpush1.msra.mxu0 0.0
    %221 = vmatprep.subr.mxu0 0.0
    %222 = vmatpush1.msra.mxu0 0.0
    %223 = vmatprep.subr.mxu0 0.0
    %224 = vmatpush1.msra.mxu0 0.0
    %225 = vmatprep.subr.mxu0 0.0
    %226 = vmatpush1.msra.mxu0 0.0
    %227 = vmatprep.subr.mxu0 0.0
    %228 = vmatpush1.msra.mxu0 0.0
    %229 = vmatprep.subr.mxu0 0.0
    %230 = vmatpush1.msra.mxu0 0.0
    %231 = vmatprep.subr.mxu0 0.0
    %232 = vmatpush1.msra.mxu0 0.0
    %233 = vmatprep.subr.mxu0 0.0
    %234 = vmatpush1.msra.mxu0 0.0
    %235 = vmatprep.subr.mxu0 0.0
    %236 = vmatpush1.msra.mxu0 0.0
    %237 = vmatprep.subr.mxu0 0.0
    %238 = vmatpush1.msra.mxu0 0.0
    %239 = vmatprep.subr.mxu0 0.0
    %240 = vmatpush1.msra.mxu0 %v19
    %241 = vmatprep.subr.mxu0 0.0
    %242 = vmatpush1.msra.mxu0 %v18
    %243 = vmatprep.subr.mxu0 0.0
    %244 = vmatpush2.msra.mxu0 0.0
    %245 = vmatprep.subr.mxu0 0.0
    %246 = vmatpush2.msra.mxu0 0.0
    %247 = vmatprep.subr.mxu0 0.0
    %248 = vmatpush2.msra.mxu0 0.0
    %249 = vmatprep.subr.mxu0 0.0
    %250 = vmatpush2.msra.mxu0 0.0
    %251 = vmatprep.subr.mxu0 0.0
    %252 = vmatpush2.msra.mxu0 0.0
    %253 = vmatprep.subr.mxu0 0.0
    %254 = vmatpush2.msra.mxu0 0.0
    %255 = vmatprep.subr.mxu0 0.0
    %256 = vmatpush2.msra.mxu0 0.0
    %257 = vmatprep.subr.mxu0 0.0
    %258 = vmatpush2.msra.mxu0 0.0
    %259 = vmatprep.subr.mxu0 0.0
    %260 = vmatpush2.msra.mxu0 0.0
    %261 = vmatprep.subr.mxu0 0.0
    %262 = vmatpush2.msra.mxu0 0.0
    %263 = vmatprep.subr.mxu0 0.0
    %264 = vmatpush2.msra.mxu0 0.0
    %265 = vmatprep.subr.mxu0 0.0
    %266 = vmatpush2.msra.mxu0 0.0
    %267 = vmatprep.subr.mxu0 0.0
    %268 = vmatpush2.msra.mxu0 0.0
    %269 = vmatprep.subr.mxu0 0.0
    %270 = vmatpush2.msra.mxu0 0.0
    %271 = vmatprep.subr.mxu0 0.0
    %272 = vmatpush2.msra.mxu0 0.0
    %273 = vmatprep.subr.mxu0 0.0
    %274 = vmatpush2.msra.mxu0 0.0
    %275 = vmatprep.mubr.f32.mxu0 0.0
    %276 = vmatmul.mubr.f32.gmra.mxu0 %v48
    %v277 = vpop.f32.mrf.mxu0
    %v278 = vadd.f32 %v210, %v277
    %v279 = vpop.f32.mrf.mxu0
    %280 = vmatprep.mubr.f32.mxu0 0.0
    %281 = vmatmul.mubr.f32.gmra.mxu0 %v51
    %v282 = vpop.f32.mrf.mxu0
    %v283 = vadd.f32 %v210, %v282
    %v284 = vpop.f32.mrf.mxu0
    %285 = vdwg.mxu0
    %v287 = vsel %vm46, %v120, 0
    %v290 = vsel %vm46, %v125, 0
    %v293 = vsel %vm46, %v199, 0
    %v296 = vsel %vm46, %v204, 0
    %298 = vmatprep.subr.mxu0 0.0
    %299 = vmatpush1.xpose.msra.mxu0 0.0
    %300 = vmatprep.subr.mxu0 0.0
    %301 = vmatpush1.xpose.msra.mxu0 0.0
    %302 = vmatprep.subr.mxu0 0.0
    %303 = vmatpush1.xpose.msra.mxu0 0.0
    %304 = vmatprep.subr.mxu0 0.0
    %305 = vmatpush1.xpose.msra.mxu0 0.0
    %306 = vmatprep.subr.mxu0 0.0
    %307 = vmatpush1.xpose.msra.mxu0 0.0
    %308 = vmatprep.subr.mxu0 0.0
    %309 = vmatpush1.xpose.msra.mxu0 0.0
    %310 = vmatprep.subr.mxu0 0.0
    %311 = vmatpush1.xpose.msra.mxu0 0.0
    %312 = vmatprep.subr.mxu0 0.0
    %313 = vmatpush1.xpose.msra.mxu0 0.0
    %314 = vmatprep.subr.mxu0 0.0
    %315 = vmatpush1.xpose.msra.mxu0 0.0
    %316 = vmatprep.subr.mxu0 0.0
    %317 = vmatpush1.xpose.msra.mxu0 0.0
    %318 = vmatprep.subr.mxu0 0.0
    %319 = vmatpush1.xpose.msra.mxu0 0.0
    %320 = vmatprep.subr.mxu0 0.0
    %321 = vmatpush1.xpose.msra.mxu0 0.0
    %322 = vmatprep.subr.mxu0 0.0
    %323 = vmatpush1.xpose.msra.mxu0 0.0
    %324 = vmatprep.subr.mxu0 0.0
    %325 = vmatpush1.xpose.msra.mxu0 0.0
    %326 = vmatprep.subr.mxu0 0.0
    %327 = vmatpush1.xpose.msra.mxu0 %v296
    %328 = vmatprep.subr.mxu0 0.0
    %329 = vmatpush1.xpose.msra.mxu0 %v293
    %330 = vmatprep.subr.mxu0 0.0
    %331 = vmatpush2.xpose.msra.mxu0 0.0
    %332 = vmatprep.subr.mxu0 0.0
    %333 = vmatpush2.xpose.msra.mxu0 0.0
    %334 = vmatprep.subr.mxu0 0.0
    %335 = vmatpush2.xpose.msra.mxu0 0.0
    %336 = vmatprep.subr.mxu0 0.0
    %337 = vmatpush2.xpose.msra.mxu0 0.0
    %338 = vmatprep.subr.mxu0 0.0
    %339 = vmatpush2.xpose.msra.mxu0 0.0
    %340 = vmatprep.subr.mxu0 0.0
    %341 = vmatpush2.xpose.msra.mxu0 0.0
    %342 = vmatprep.subr.mxu0 0.0
    %343 = vmatpush2.xpose.msra.mxu0 0.0
    %344 = vmatprep.subr.mxu0 0.0
    %345 = vmatpush2.xpose.msra.mxu0 0.0
    %346 = vmatprep.subr.mxu0 0.0
    %347 = vmatpush2.xpose.msra.mxu0 0.0
    %348 = vmatprep.subr.mxu0 0.0
    %349 = vmatpush2.xpose.msra.mxu0 0.0
    %350 = vmatprep.subr.mxu0 0.0
    %351 = vmatpush2.xpose.msra.mxu0 0.0
    %352 = vmatprep.subr.mxu0 0.0
    %353 = vmatpush2.xpose.msra.mxu0 0.0
    %354 = vmatprep.subr.mxu0 0.0
    %355 = vmatpush2.xpose.msra.mxu0 0.0
    %356 = vmatprep.subr.mxu0 0.0
    %357 = vmatpush2.xpose.msra.mxu0 0.0
    %358 = vmatprep.subr.mxu0 0.0
    %359 = vmatpush2.xpose.msra.mxu0 0.0
    %360 = vmatprep.subr.mxu0 0.0
    %361 = vmatpush2.xpose.msra.mxu0 0.0
    %362 = vmatprep.mubr.f32.mxu0 0.0
    %363 = vmatmul.mubr.f32.gmra.mxu0 %v287
    %v364 = vpop.f32.mrf.mxu0
    %v365 = vadd.f32 0.0, %v364
    %v366 = vpop.f32.mrf.mxu0
    %367 = vmatprep.mubr.f32.mxu0 0.0
    %368 = vmatmul.mubr.f32.gmra.mxu0 %v290
    %v369 = vpop.f32.mrf.mxu0
    %v370 = vadd.f32 0.0, %v369
    %v371 = vpop.f32.mrf.mxu0
    %372 = vdwg.mxu0
    %v373 = vmul.f32 %v365, 0.25
    %v374 = vmul.f32 %v370, 0.25
    %v375 = vlaneseq
    %v376 = vshrl.u32 %v375, 7
    %v377 = vcombine.low %v376, %v376
    %v379 = vunpack.c.l.s4 1983009808
    %v380 = vunpack.c.0.s8 %v379
    %v381 = vlaneseq
    %v382 = vshrl.u32 %v381, 7
    %v383 = vsub.s32 %v380, %v382
    %v384 = vrot.slane %v377, %v383
    %v385 = vcombine.low %v384, %v384
    %v387 = vunpack.c.l.s4 1934713408
    %v388 = vunpack.c.0.s8 %v387
    %v389 = vlaneseq
    %v390 = vshrl.u32 %v389, 7
    %v391 = vsub.s32 %v388, %v390
    %v392 = vrot.slane %v385, %v391
    %v393 = vcombine.low %v392, %v392
    %v394 = vcombine.high %v392, %v392
    %395 = vrot.lane.b32.xlu0 %v394, 8
    %v396 = vpop.permute.xlu0 %395
    %vm397 = vcmask 64512
    %v398 = vsel %vm397, %v393, %v396
    %vm399 = vcmp.eq.s32.totalorder %v398, 0
    %vm400 = vcmp.eq.s32.totalorder %v398, 1
    %v401 = vsel %vm399, %v373, -1e+30
    %v402 = vsel %vm400, %v374, -1e+30
    %v403 = vsel %vm46, %v401, -inf
    %404 = vmax.xlane.f32.xlu0 %v403
    %v405 = vpop.xlane.xlu0 %404
    %v406 = vsel %vm46, %v402, -inf
    %407 = vmax.xlane.f32.xlu0 %v406
    %v408 = vpop.xlane.xlu0 %407
    %v409 = vsub.f32 %v401, %v405
    %v410 = vsub.f32 %v402, %v408
    %v411 = vmul.f32 %v409, 1.442695
    %v412 = vpow.pop %v411
    %v413 = vmul.f32 %v410, 1.442695
    %v414 = vpow.pop %v413
    %v415 = vsel %vm46, %v412, 0.0
    %416 = vadd.xlane.f32.xlu0 %v415
    %v417 = vpop.xlane.xlu0 %416
    %v418 = vsel %vm46, %v414, 0.0
    %419 = vadd.xlane.f32.xlu0 %v418
    %v420 = vpop.xlane.xlu0 %419
    %v421 = vrcp.pop %v417
    %v422 = vmul.f32 %v412, %v421
    %v423 = vrcp.pop %v420
    %v424 = vmul.f32 %v414, %v423
    %v426 = vsel %vm46, %v422, 0
    %v429 = vsel %vm46, %v424, 0
    %431 = vmatprep.subr.mxu0 0.0
    %432 = vmatpush1.msra.mxu0 0.0
    %433 = vmatprep.subr.mxu0 0.0
    %434 = vmatpush1.msra.mxu0 0.0
    %435 = vmatprep.subr.mxu0 0.0
    %436 = vmatpush1.msra.mxu0 0.0
    %437 = vmatprep.subr.mxu0 0.0
    %438 = vmatpush1.msra.mxu0 0.0
    %439 = vmatprep.subr.mxu0 0.0
    %440 = vmatpush1.msra.mxu0 0.0
    %441 = vmatprep.subr.mxu0 0.0
    %442 = vmatpush1.msra.mxu0 0.0
    %443 = vmatprep.subr.mxu0 0.0
    %444 = vmatpush1.msra.mxu0 0.0
    %445 = vmatprep.subr.mxu0 0.0
    %446 = vmatpush1.msra.mxu0 0.0
    %447 = vmatprep.subr.mxu0 0.0
    %448 = vmatpush1.msra.mxu0 0.0
    %449 = vmatprep.subr.mxu0 0.0
    %450 = vmatpush1.msra.mxu0 0.0
    %451 = vmatprep.subr.mxu0 0.0
    %452 = vmatpush1.msra.mxu0 0.0
    %453 = vmatprep.subr.mxu0 0.0
    %454 = vmatpush1.msra.mxu0 0.0
    %455 = vmatprep.subr.mxu0 0.0
    %456 = vmatpush1.msra.mxu0 0.0
    %457 = vmatprep.subr.mxu0 0.0
    %458 = vmatpush1.msra.mxu0 0.0
    %459 = vmatprep.subr.mxu0 0.0
    %460 = vmatpush1.msra.mxu0 %v283
    %461 = vmatprep.subr.mxu0 0.0
    %462 = vmatpush1.msra.mxu0 %v278
    %463 = vmatprep.subr.mxu0 0.0
    %464 = vmatpush2.msra.mxu0 0.0
    %465 = vmatprep.subr.mxu0 0.0
    %466 = vmatpush2.msra.mxu0 0.0
    %467 = vmatprep.subr.mxu0 0.0
    %468 = vmatpush2.msra.mxu0 0.0
    %469 = vmatprep.subr.mxu0 0.0
    %470 = vmatpush2.msra.mxu0 0.0
    %471 = vmatprep.subr.mxu0 0.0
    %472 = vmatpush2.msra.mxu0 0.0
    %473 = vmatprep.subr.mxu0 0.0
    %474 = vmatpush2.msra.mxu0 0.0
    %475 = vmatprep.subr.mxu0 0.0
    %476 = vmatpush2.msra.mxu0 0.0
    %477 = vmatprep.subr.mxu0 0.0
    %478 = vmatpush2.msra.mxu0 0.0
    %479 = vmatprep.subr.mxu0 0.0
    %480 = vmatpush2.msra.mxu0 0.0
    %481 = vmatprep.subr.mxu0 0.0
    %482 = vmatpush2.msra.mxu0 0.0
    %483 = vmatprep.subr.mxu0 0.0
    %484 = vmatpush2.msra.mxu0 0.0
    %485 = vmatprep.subr.mxu0 0.0
    %486 = vmatpush2.msra.mxu0 0.0
    %487 = vmatprep.subr.mxu0 0.0
    %488 = vmatpush2.msra.mxu0 0.0
    %489 = vmatprep.subr.mxu0 0.0
    %490 = vmatpush2.msra.mxu0 0.0
    %491 = vmatprep.subr.mxu0 0.0
    %492 = vmatpush2.msra.mxu0 0.0
    %493 = vmatprep.subr.mxu0 0.0
    %494 = vmatpush2.msra.mxu0 0.0
    %495 = vmatprep.mubr.f32.mxu0 0.0
    %496 = vmatmul.mubr.f32.gmra.mxu0 %v426
    %v497 = vpop.f32.mrf.mxu0
    %v498 = vadd.f32 0.0, %v497
    %v499 = vpop.f32.mrf.mxu0
    %500 = vmatprep.mubr.f32.mxu0 0.0
    %501 = vmatmul.mubr.f32.gmra.mxu0 %v429
    %v502 = vpop.f32.mrf.mxu0
    %v503 = vadd.f32 0.0, %v502
    %v504 = vpop.f32.mrf.mxu0
    %505 = vdwg.mxu0
    %v506 = vlaneseq
    %v507 = vshrl.u32 %v506, 7
    %v508 = vsub.s32 0, %v507
    %v509 = vrot.slane %v35, %v508
    %v511 = vsel %vm46, %v498, 0
    %v514 = vsel %vm46, %v503, 0
    %516 = vmatprep.subr.mxu0 0.0
    %517 = vmatpush1.msra.mxu0 0.0
    %518 = vmatprep.subr.mxu0 0.0
    %519 = vmatpush1.msra.mxu0 0.0
    %520 = vmatprep.subr.mxu0 0.0
    %521 = vmatpush1.msra.mxu0 0.0
    %522 = vmatprep.subr.mxu0 0.0
    %523 = vmatpush1.msra.mxu0 0.0
    %524 = vmatprep.subr.mxu0 0.0
    %525 = vmatpush1.msra.mxu0 0.0
    %526 = vmatprep.subr.mxu0 0.0
    %527 = vmatpush1.msra.mxu0 0.0
    %528 = vmatprep.subr.mxu0 0.0
    %529 = vmatpush1.msra.mxu0 0.0
    %530 = vmatprep.subr.mxu0 0.0
    %531 = vmatpush1.msra.mxu0 0.0
    %532 = vmatprep.subr.mxu0 0.0
    %533 = vmatpush1.msra.mxu0 0.0
    %534 = vmatprep.subr.mxu0 0.0
    %535 = vmatpush1.msra.mxu0 0.0
    %536 = vmatprep.subr.mxu0 0.0
    %537 = vmatpush1.msra.mxu0 0.0
    %538 = vmatprep.subr.mxu0 0.0
    %539 = vmatpush1.msra.mxu0 0.0
    %540 = vmatprep.subr.mxu0 0.0
    %541 = vmatpush1.msra.mxu0 0.0
    %542 = vmatprep.subr.mxu0 0.0
    %543 = vmatpush1.msra.mxu0 0.0
    %544 = vmatprep.subr.mxu0 0.0
    %545 = vmatpush1.msra.mxu0 %v21
    %546 = vmatprep.subr.mxu0 0.0
    %547 = vmatpush1.msra.mxu0 %v20
    %548 = vmatprep.subr.mxu0 0.0
    %549 = vmatpush2.msra.mxu0 0.0
    %550 = vmatprep.subr.mxu0 0.0
    %551 = vmatpush2.msra.mxu0 0.0
    %552 = vmatprep.subr.mxu0 0.0
    %553 = vmatpush2.msra.mxu0 0.0
    %554 = vmatprep.subr.mxu0 0.0
    %555 = vmatpush2.msra.mxu0 0.0
    %556 = vmatprep.subr.mxu0 0.0
    %557 = vmatpush2.msra.mxu0 0.0
    %558 = vmatprep.subr.mxu0 0.0
    %559 = vmatpush2.msra.mxu0 0.0
    %560 = vmatprep.subr.mxu0 0.0
    %561 = vmatpush2.msra.mxu0 0.0
    %562 = vmatprep.subr.mxu0 0.0
    %563 = vmatpush2.msra.mxu0 0.0
    %564 = vmatprep.subr.mxu0 0.0
    %565 = vmatpush2.msra.mxu0 0.0
    %566 = vmatprep.subr.mxu0 0.0
    %567 = vmatpush2.msra.mxu0 0.0
    %568 = vmatprep.subr.mxu0 0.0
    %569 = vmatpush2.msra.mxu0 0.0
    %570 = vmatprep.subr.mxu0 0.0
    %571 = vmatpush2.msra.mxu0 0.0
    %572 = vmatprep.subr.mxu0 0.0
    %573 = vmatpush2.msra.mxu0 0.0
    %574 = vmatprep.subr.mxu0 0.0
    %575 = vmatpush2.msra.mxu0 0.0
    %576 = vmatprep.subr.mxu0 0.0
    %577 = vmatpush2.msra.mxu0 0.0
    %578 = vmatprep.subr.mxu0 0.0
    %579 = vmatpush2.msra.mxu0 0.0
    %580 = vmatprep.mubr.f32.mxu0 0.0
    %581 = vmatmul.mubr.f32.gmra.mxu0 %v511
    %v582 = vpop.f32.mrf.mxu0
    %v583 = vadd.f32 %v509, %v582
    %v584 = vpop.f32.mrf.mxu0
    %585 = vmatprep.mubr.f32.mxu0 0.0
    %586 = vmatmul.mubr.f32.gmra.mxu0 %v514
    %v587 = vpop.f32.mrf.mxu0
    %v588 = vadd.f32 %v509, %v587
    %v589 = vpop.f32.mrf.mxu0
    %590 = vdwg.mxu0
    %v591 = vadd.f32 %v12, %v583
    %v592 = vadd.f32 %v13, %v588
    %v593 = vsel %vm46, %v591, 0.0
    %594 = vadd.xlane.f32.xlu0 %v593
    %v595 = vpop.xlane.xlu0 %594
    %v596 = vsel %vm46, %v592, 0.0
    %597 = vadd.xlane.f32.xlu0 %v596
    %v598 = vpop.xlane.xlu0 %597
    %v599 = vrcp.pop 16.0
    %v600 = vmul.f32 %v595, %v599
    %v601 = vmul.f32 %v598, %v599
    %v602 = vsub.f32 %v591, %v600
    %v603 = vsub.f32 %v592, %v601
    %v604 = vmul.f32 %v602, %v602
    %v605 = vmul.f32 %v603, %v603
    %v606 = vsel %vm46, %v604, 0.0
    %607 = vadd.xlane.f32.xlu0 %v606
    %v608 = vpop.xlane.xlu0 %607
    %v609 = vsel %vm46, %v605, 0.0
    %610 = vadd.xlane.f32.xlu0 %v609
    %v611 = vpop.xlane.xlu0 %610
    %v612 = vmul.f32 %v608, %v599
    %v613 = vmul.f32 %v611, %v599
    %v614 = vadd.f32 %v612, 1e-05
    %v615 = vadd.f32 %v613, 1e-05
    %v616 = vrsqrt.pop %v614
    %v617 = vrsqrt.pop %v615
    %v618 = vmul.f32 %v602, %v616
    %v619 = vmul.f32 %v603, %v617
    %v620 = vlaneseq
    %v621 = vshrl.u32 %v620, 7
    %v622 = vsub.s32 0, %v621
    %v623 = vrot.slane %v38, %v622
    %v624 = vmul.f32 %v618, %v623
    %v625 = vmul.f32 %v619, %v623
    %v626 = vlaneseq
    %v627 = vshrl.u32 %v626, 7
    %v628 = vsub.s32 0, %v627
    %v629 = vrot.slane %v39, %v628
    %v630 = vadd.f32 %v624, %v629
    %v631 = vadd.f32 %v625, %v629
    %v632 = vlaneseq
    %v633 = vshrl.u32 %v632, 7
    %v634 = vsub.s32 0, %v633
    %v635 = vrot.slane %v36, %v634
    %v637 = vsel %vm46, %v630, 0
    %v640 = vsel %vm46, %v631, 0
    %642 = vmatprep.subr.mxu0 0.0
    %643 = vmatpush1.msra.mxu0 0.0
    %644 = vmatprep.subr.mxu0 0.0
    %645 = vmatpush1.msra.mxu0 0.0
    %646 = vmatprep.subr.mxu0 0.0
    %647 = vmatpush1.msra.mxu0 0.0
    %648 = vmatprep.subr.mxu0 0.0
    %649 = vmatpush1.msra.mxu0 0.0
    %650 = vmatprep.subr.mxu0 0.0
    %651 = vmatpush1.msra.mxu0 0.0
    %652 = vmatprep.subr.mxu0 0.0
    %653 = vmatpush1.msra.mxu0 0.0
    %654 = vmatprep.subr.mxu0 0.0
    %655 = vmatpush1.msra.mxu0 0.0
    %656 = vmatprep.subr.mxu0 0.0
    %657 = vmatpush1.msra.mxu0 0.0
    %658 = vmatprep.subr.mxu0 0.0
    %659 = vmatpush1.msra.mxu0 0.0
    %660 = vmatprep.subr.mxu0 0.0
    %661 = vmatpush1.msra.mxu0 0.0
    %662 = vmatprep.subr.mxu0 0.0
    %663 = vmatpush1.msra.mxu0 0.0
    %664 = vmatprep.subr.mxu0 0.0
    %665 = vmatpush1.msra.mxu0 0.0
    %666 = vmatprep.subr.mxu0 0.0
    %667 = vmatpush1.msra.mxu0 0.0
    %668 = vmatprep.subr.mxu0 0.0
    %669 = vmatpush1.msra.mxu0 0.0
    %670 = vmatprep.subr.mxu0 0.0
    %671 = vmatpush1.msra.mxu0 %v23
    %672 = vmatprep.subr.mxu0 0.0
    %673 = vmatpush1.msra.mxu0 %v22
    %674 = vmatprep.subr.mxu0 0.0
    %675 = vmatpush2.msra.mxu0 0.0
    %676 = vmatprep.subr.mxu0 0.0
    %677 = vmatpush2.msra.mxu0 0.0
    %678 = vmatprep.subr.mxu0 0.0
    %679 = vmatpush2.msra.mxu0 0.0
    %680 = vmatprep.subr.mxu0 0.0
    %681 = vmatpush2.msra.mxu0 0.0
    %682 = vmatprep.subr.mxu0 0.0
    %683 = vmatpush2.msra.mxu0 0.0
    %684 = vmatprep.subr.mxu0 0.0
    %685 = vmatpush2.msra.mxu0 0.0
    %686 = vmatprep.subr.mxu0 0.0
    %687 = vmatpush2.msra.mxu0 0.0
    %688 = vmatprep.subr.mxu0 0.0
    %689 = vmatpush2.msra.mxu0 0.0
    %690 = vmatprep.subr.mxu0 0.0
    %691 = vmatpush2.msra.mxu0 0.0
    %692 = vmatprep.subr.mxu0 0.0
    %693 = vmatpush2.msra.mxu0 0.0
    %694 = vmatprep.subr.mxu0 0.0
    %695 = vmatpush2.msra.mxu0 0.0
    %696 = vmatprep.subr.mxu0 0.0
    %697 = vmatpush2.msra.mxu0 0.0
    %698 = vmatprep.subr.mxu0 0.0
    %699 = vmatpush2.msra.mxu0 0.0
    %700 = vmatprep.subr.mxu0 0.0
    %701 = vmatpush2.msra.mxu0 0.0
    %702 = vmatprep.subr.mxu0 0.0
    %703 = vmatpush2.msra.mxu0 0.0
    %704 = vmatprep.subr.mxu0 0.0
    %705 = vmatpush2.msra.mxu0 0.0
    %706 = vmatprep.mubr.f32.mxu0 0.0
    %707 = vmatmul.mubr.f32.gmra.mxu0 %v637
    %v708 = vpop.f32.mrf.mxu0
    %v709 = vadd.f32 %v635, %v708
    %v710 = vpop.f32.mrf.mxu0
    %711 = vmatprep.mubr.f32.mxu0 0.0
    %712 = vmatmul.mubr.f32.gmra.mxu0 %v640
    %v713 = vpop.f32.mrf.mxu0
    %v714 = vadd.f32 %v635, %v713
    %v715 = vpop.f32.mrf.mxu0
    %716 = vdwg.mxu0
    %v717 = vmax.f32 %v709, 0.0
    %v718 = vmax.f32 %v714, 0.0
    %v719 = vlaneseq
    %v720 = vshrl.u32 %v719, 7
    %v721 = vsub.s32 0, %v720
    %v722 = vrot.slane %v37, %v721
    %vm723 = vcmask 523264
    %v725 = vsel %vm723, %v717, 0
    %v728 = vsel %vm723, %v718, 0
    %730 = vmatprep.subr.mxu0 0.0
    %731 = vmatpush1.msra.mxu0 0.0
    %732 = vmatprep.subr.mxu0 0.0
    %733 = vmatpush1.msra.mxu0 0.0
    %734 = vmatprep.subr.mxu0 0.0
    %735 = vmatpush1.msra.mxu0 0.0
    %736 = vmatprep.subr.mxu0 0.0
    %737 = vmatpush1.msra.mxu0 0.0
    %738 = vmatprep.subr.mxu0 0.0
    %739 = vmatpush1.msra.mxu0 0.0
    %740 = vmatprep.subr.mxu0 0.0
    %741 = vmatpush1.msra.mxu0 0.0
    %742 = vmatprep.subr.mxu0 0.0
    %743 = vmatpush1.msra.mxu0 0.0
    %744 = vmatprep.subr.mxu0 0.0
    %745 = vmatpush1.msra.mxu0 0.0
    %746 = vmatprep.subr.mxu0 0.0
    %747 = vmatpush1.msra.mxu0 %v31
    %748 = vmatprep.subr.mxu0 0.0
    %749 = vmatpush1.msra.mxu0 %v30
    %750 = vmatprep.subr.mxu0 0.0
    %751 = vmatpush1.msra.mxu0 %v29
    %752 = vmatprep.subr.mxu0 0.0
    %753 = vmatpush1.msra.mxu0 %v28
    %754 = vmatprep.subr.mxu0 0.0
    %755 = vmatpush1.msra.mxu0 %v27
    %756 = vmatprep.subr.mxu0 0.0
    %757 = vmatpush1.msra.mxu0 %v26
    %758 = vmatprep.subr.mxu0 0.0
    %759 = vmatpush1.msra.mxu0 %v25
    %760 = vmatprep.subr.mxu0 0.0
    %761 = vmatpush1.msra.mxu0 %v24
    %762 = vmatprep.subr.mxu0 0.0
    %763 = vmatpush2.msra.mxu0 0.0
    %764 = vmatprep.subr.mxu0 0.0
    %765 = vmatpush2.msra.mxu0 0.0
    %766 = vmatprep.subr.mxu0 0.0
    %767 = vmatpush2.msra.mxu0 0.0
    %768 = vmatprep.subr.mxu0 0.0
    %769 = vmatpush2.msra.mxu0 0.0
    %770 = vmatprep.subr.mxu0 0.0
    %771 = vmatpush2.msra.mxu0 0.0
    %772 = vmatprep.subr.mxu0 0.0
    %773 = vmatpush2.msra.mxu0 0.0
    %774 = vmatprep.subr.mxu0 0.0
    %775 = vmatpush2.msra.mxu0 0.0
    %776 = vmatprep.subr.mxu0 0.0
    %777 = vmatpush2.msra.mxu0 0.0
    %778 = vmatprep.subr.mxu0 0.0
    %779 = vmatpush2.msra.mxu0 0.0
    %780 = vmatprep.subr.mxu0 0.0
    %781 = vmatpush2.msra.mxu0 0.0
    %782 = vmatprep.subr.mxu0 0.0
    %783 = vmatpush2.msra.mxu0 0.0
    %784 = vmatprep.subr.mxu0 0.0
    %785 = vmatpush2.msra.mxu0 0.0
    %786 = vmatprep.subr.mxu0 0.0
    %787 = vmatpush2.msra.mxu0 0.0
    %788 = vmatprep.subr.mxu0 0.0
    %789 = vmatpush2.msra.mxu0 0.0
    %790 = vmatprep.subr.mxu0 0.0
    %791 = vmatpush2.msra.mxu0 0.0
    %792 = vmatprep.subr.mxu0 0.0
    %793 = vmatpush2.msra.mxu0 0.0
    %794 = vmatprep.mubr.f32.mxu0 0.0
    %795 = vmatmul.mubr.f32.gmra.mxu0 %v725
    %v796 = vpop.f32.mrf.mxu0
    %v797 = vadd.f32 %v722, %v796
    %v798 = vpop.f32.mrf.mxu0
    %799 = vmatprep.mubr.f32.mxu0 0.0
    %800 = vmatmul.mubr.f32.gmra.mxu0 %v728
    %v801 = vpop.f32.mrf.mxu0
    %v802 = vadd.f32 %v722, %v801
    %v803 = vpop.f32.mrf.mxu0
    %804 = vdwg.mxu0
    %v805 = vadd.f32 %v630, %v797
    %v806 = vadd.f32 %v631, %v802
    %v807 = vsel %vm46, %v805, 0.0
    %808 = vadd.xlane.f32.xlu0 %v807
    %v809 = vpop.xlane.xlu0 %808
    %v810 = vsel %vm46, %v806, 0.0
    %811 = vadd.xlane.f32.xlu0 %v810
    %v812 = vpop.xlane.xlu0 %811
    %v813 = vmul.f32 %v809, %v599
    %v814 = vmul.f32 %v812, %v599
    %v815 = vsub.f32 %v805, %v813
    %v816 = vsub.f32 %v806, %v814
    %v817 = vmul.f32 %v815, %v815
    %v818 = vmul.f32 %v816, %v816
    %v819 = vsel %vm46, %v817, 0.0
    %820 = vadd.xlane.f32.xlu0 %v819
    %v821 = vpop.xlane.xlu0 %820
    %v822 = vsel %vm46, %v818, 0.0
    %823 = vadd.xlane.f32.xlu0 %v822
    %v824 = vpop.xlane.xlu0 %823
    %v825 = vmul.f32 %v821, %v599
    %v826 = vmul.f32 %v824, %v599
    %v827 = vadd.f32 %v825, 1e-05
    %v828 = vadd.f32 %v826, 1e-05
    %v829 = vrsqrt.pop %v827
    %v830 = vrsqrt.pop %v828
    %v831 = vmul.f32 %v815, %v829
    %v832 = vmul.f32 %v816, %v830
    %v833 = vlaneseq
    %v834 = vshrl.u32 %v833, 7
    %v835 = vsub.s32 0, %v834
    %v836 = vrot.slane %v40, %v835
    %v837 = vmul.f32 %v831, %v836
    %v838 = vmul.f32 %v832, %v836
    %v839 = vlaneseq
    %v840 = vshrl.u32 %v839, 7
    %v841 = vsub.s32 0, %v840
    %v842 = vrot.slane %v41, %v841
    %v843 = vadd.f32 %v837, %v842
    %v844 = vadd.f32 %v838, %v842
    %845 = vxpose.xlu0.b32.start [1/16] %v843, 128
    %846 = vxpose.xlu0.b32.cont [2/16] 0.0, 128
    %847 = vxpose.xlu0.b32.cont [3/16] 0.0, 128
    %848 = vxpose.xlu0.b32.cont [4/16] 0.0, 128
    %849 = vxpose.xlu0.b32.cont [5/16] 0.0, 128
    %850 = vxpose.xlu0.b32.cont [6/16] 0.0, 128
    %851 = vxpose.xlu0.b32.cont [7/16] 0.0, 128
    %852 = vxpose.xlu0.b32.cont [8/16] 0.0, 128
    %853 = vxpose.xlu0.b32.cont [9/16] 0.0, 128
    %854 = vxpose.xlu0.b32.cont [10/16] 0.0, 128
    %855 = vxpose.xlu0.b32.cont [11/16] 0.0, 128
    %856 = vxpose.xlu0.b32.cont [12/16] 0.0, 128
    %857 = vxpose.xlu0.b32.cont [13/16] 0.0, 128
    %858 = vxpose.xlu0.b32.cont [14/16] 0.0, 128
    %859 = vxpose.xlu0.b32.cont [15/16] 0.0, 128
    %860 = vxpose.xlu0.b32.end [16/16] 0.0, 128
    %v861 = vpop.trf.xlu0
    %v862 = vpop.trf.xlu0
    %v863 = vpop.trf.xlu0
    %v864 = vpop.trf.xlu0
    %v865 = vpop.trf.xlu0
    %v866 = vpop.trf.xlu0
    %v867 = vpop.trf.xlu0
    %v868 = vpop.trf.xlu0
    %v869 = vpop.trf.xlu0
    %v870 = vpop.trf.xlu0
    %v871 = vpop.trf.xlu0
    %v872 = vpop.trf.xlu0
    %v873 = vpop.trf.xlu0
    %v874 = vpop.trf.xlu0
    %v875 = vpop.trf.xlu0
    %v876 = vpop.trf.xlu0
    %877 = vxpose.xlu0.b32.start [1/16] %v844, 128
    %878 = vxpose.xlu0.b32.cont [2/16] 0.0, 128
    %879 = vxpose.xlu0.b32.cont [3/16] 0.0, 128
    %880 = vxpose.xlu0.b32.cont [4/16] 0.0, 128
    %881 = vxpose.xlu0.b32.cont [5/16] 0.0, 128
    %882 = vxpose.xlu0.b32.cont [6/16] 0.0, 128
    %883 = vxpose.xlu0.b32.cont [7/16] 0.0, 128
    %884 = vxpose.xlu0.b32.cont [8/16] 0.0, 128
    %885 = vxpose.xlu0.b32.cont [9/16] 0.0, 128
    %886 = vxpose.xlu0.b32.cont [10/16] 0.0, 128
    %887 = vxpose.xlu0.b32.cont [11/16] 0.0, 128
    %888 = vxpose.xlu0.b32.cont [12/16] 0.0, 128
    %889 = vxpose.xlu0.b32.cont [13/16] 0.0, 128
    %890 = vxpose.xlu0.b32.cont [14/16] 0.0, 128
    %891 = vxpose.xlu0.b32.cont [15/16] 0.0, 128
    %892 = vxpose.xlu0.b32.end [16/16] 0.0, 128
    %v893 = vpop.trf.xlu0
    %v894 = vpop.trf.xlu0
    %v895 = vpop.trf.xlu0
    %v896 = vpop.trf.xlu0
    %v897 = vpop.trf.xlu0
    %v898 = vpop.trf.xlu0
    %v899 = vpop.trf.xlu0
    %v900 = vpop.trf.xlu0
    %v901 = vpop.trf.xlu0
    %v902 = vpop.trf.xlu0
    %v903 = vpop.trf.xlu0
    %v904 = vpop.trf.xlu0
    %v905 = vpop.trf.xlu0
    %v906 = vpop.trf.xlu0
    %v907 = vpop.trf.xlu0
    %v908 = vpop.trf.xlu0
    %v909 = vld [vmem:[%s1 + $0x9a] sm:$0xff]
    %v910 = vld [vmem:[%s1 + $0xa2] sm:$0xff]
    %v911 = vld [vmem:[%s1 + $0xaa] sm:$0xff]
    %v912 = vld [vmem:[%s1 + $0xb2] sm:$0xff]
    %v913 = vld [vmem:[%s1 + $0xba] sm:$0xff]
    %v914 = vld [vmem:[%s1 + $0xc2] sm:$0xff]
    %v915 = vld [vmem:[%s1 + $0xca] sm:$0xff]
    %v916 = vld [vmem:[%s1 + $0xd2] sm:$0xff]
    %v917 = vld [vmem:[%s1 + $0xda] sm:$0xff]
    %v918 = vld [vmem:[%s1 + $0xe2] sm:$0x1]
    %v919 = vld [vmem:[%s1 + $0xe3] sm:$0x1]
    %v920 = vld [vmem:[%s1 + $0xe4] sm:$0x1]
    %v921 = vld [vmem:[%s1 + $0xe5] sm:$0x1]
    %v922 = vld [vmem:[%s1 + $0xe6] sm:$0x1]
    %v923 = vld [vmem:[%s1 + $0xe7] sm:$0x1]
    %v924 = vld [vmem:[%s1 + $0xe8] sm:$0x1]
    %v925 = vld [vmem:[%s1 + $0xe9] sm:$0x1]
    %v926 = vld [vmem:[%s1 + $0xea] sm:$0x1]
    %v927 = vld [vmem:[%s1 + $0xeb] sm:$0x1]
    %v928 = vlaneseq
    %v929 = vshrl.u32 %v928, 7
    %v930 = vsub.s32 0, %v929
    %v931 = vrot.slane %v918, %v930
    %v933 = vsel %vm397, %v861, 0
    %v936 = vsel %vm397, %v862, 0
    %v939 = vsel %vm397, %v893, 0
    %v942 = vsel %vm397, %v894, 0
    %944 = vmatprep.subr.mxu0 0.0
    %945 = vmatpush1.msra.mxu0 0.0
    %946 = vmatprep.subr.mxu0 0.0
    %947 = vmatpush1.msra.mxu0 0.0
    %948 = vmatprep.subr.mxu0 0.0
    %949 = vmatpush1.msra.mxu0 0.0
    %950 = vmatprep.subr.mxu0 0.0
    %951 = vmatpush1.msra.mxu0 0.0
    %952 = vmatprep.subr.mxu0 0.0
    %953 = vmatpush1.msra.mxu0 0.0
    %954 = vmatprep.subr.mxu0 0.0
    %955 = vmatpush1.msra.mxu0 0.0
    %956 = vmatprep.subr.mxu0 0.0
    %957 = vmatpush1.msra.mxu0 0.0
    %958 = vmatprep.subr.mxu0 0.0
    %959 = vmatpush1.msra.mxu0 0.0
    %960 = vmatprep.subr.mxu0 0.0
    %961 = vmatpush1.msra.mxu0 0.0
    %962 = vmatprep.subr.mxu0 0.0
    %963 = vmatpush1.msra.mxu0 0.0
    %964 = vmatprep.subr.mxu0 0.0
    %965 = vmatpush1.msra.mxu0 0.0
    %966 = vmatprep.subr.mxu0 0.0
    %967 = vmatpush1.msra.mxu0 0.0
    %968 = vmatprep.subr.mxu0 0.0
    %969 = vmatpush1.msra.mxu0 0.0
    %970 = vmatprep.subr.mxu0 0.0
    %971 = vmatpush1.msra.mxu0 0.0
    %972 = vmatprep.subr.mxu0 0.0
    %973 = vmatpush1.msra.mxu0 0.0
    %974 = vmatprep.subr.mxu0 0.0
    %975 = vmatpush1.msra.mxu0 %v909
    %976 = vmatprep.subr.mxu0 0.0
    %977 = vmatpush2.msra.mxu0 0.0
    %978 = vmatprep.subr.mxu0 0.0
    %979 = vmatpush2.msra.mxu0 0.0
    %980 = vmatprep.subr.mxu0 0.0
    %981 = vmatpush2.msra.mxu0 0.0
    %982 = vmatprep.subr.mxu0 0.0
    %983 = vmatpush2.msra.mxu0 0.0
    %984 = vmatprep.subr.mxu0 0.0
    %985 = vmatpush2.msra.mxu0 0.0
    %986 = vmatprep.subr.mxu0 0.0
    %987 = vmatpush2.msra.mxu0 0.0
    %988 = vmatprep.subr.mxu0 0.0
    %989 = vmatpush2.msra.mxu0 0.0
    %990 = vmatprep.subr.mxu0 0.0
    %991 = vmatpush2.msra.mxu0 0.0
    %992 = vmatprep.subr.mxu0 0.0
    %993 = vmatpush2.msra.mxu0 0.0
    %994 = vmatprep.subr.mxu0 0.0
    %995 = vmatpush2.msra.mxu0 0.0
    %996 = vmatprep.subr.mxu0 0.0
    %997 = vmatpush2.msra.mxu0 0.0
    %998 = vmatprep.subr.mxu0 0.0
    %999 = vmatpush2.msra.mxu0 0.0
    %1000 = vmatprep.subr.mxu0 0.0
    %1001 = vmatpush2.msra.mxu0 0.0
    %1002 = vmatprep.subr.mxu0 0.0
    %1003 = vmatpush2.msra.mxu0 0.0
    %1004 = vmatprep.subr.mxu0 0.0
    %1005 = vmatpush2.msra.mxu0 0.0
    %1006 = vmatprep.subr.mxu0 0.0
    %1007 = vmatpush2.msra.mxu0 0.0
    %1008 = vmatprep.mubr.f32.mxu0 0.0
    %1009 = vmatmul.mubr.f32.gmra.mxu0 %v933
    %v1010 = vpop.f32.mrf.mxu0
    %v1011 = vadd.f32 %v931, %v1010
    %v1012 = vpop.f32.mrf.mxu0
    %1013 = vmatprep.mubr.f32.mxu0 0.0
    %1014 = vmatmul.mubr.f32.gmra.mxu0 %v936
    %v1015 = vpop.f32.mrf.mxu0
    %v1016 = vadd.f32 %v931, %v1015
    %v1017 = vpop.f32.mrf.mxu0
    %1018 = vmatprep.mubr.f32.mxu0 0.0
    %1019 = vmatmul.mubr.f32.gmra.mxu0 %v939
    %v1020 = vpop.f32.mrf.mxu0
    %v1021 = vadd.f32 %v931, %v1020
    %v1022 = vpop.f32.mrf.mxu0
    %1023 = vmatprep.mubr.f32.mxu0 0.0
    %1024 = vmatmul.mubr.f32.gmra.mxu0 %v942
    %v1025 = vpop.f32.mrf.mxu0
    %v1026 = vadd.f32 %v931, %v1025
    %v1027 = vpop.f32.mrf.mxu0
    %1028 = vdwg.mxu0
    %v1029 = vlaneseq
    %v1030 = vshrl.u32 %v1029, 7
    %v1031 = vsub.s32 0, %v1030
    %v1032 = vrot.slane %v919, %v1031
    %1033 = vmatprep.subr.mxu0 0.0
    %1034 = vmatpush1.msra.mxu0 0.0
    %1035 = vmatprep.subr.mxu0 0.0
    %1036 = vmatpush1.msra.mxu0 0.0
    %1037 = vmatprep.subr.mxu0 0.0
    %1038 = vmatpush1.msra.mxu0 0.0
    %1039 = vmatprep.subr.mxu0 0.0
    %1040 = vmatpush1.msra.mxu0 0.0
    %1041 = vmatprep.subr.mxu0 0.0
    %1042 = vmatpush1.msra.mxu0 0.0
    %1043 = vmatprep.subr.mxu0 0.0
    %1044 = vmatpush1.msra.mxu0 0.0
    %1045 = vmatprep.subr.mxu0 0.0
    %1046 = vmatpush1.msra.mxu0 0.0
    %1047 = vmatprep.subr.mxu0 0.0
    %1048 = vmatpush1.msra.mxu0 0.0
    %1049 = vmatprep.subr.mxu0 0.0
    %1050 = vmatpush1.msra.mxu0 0.0
    %1051 = vmatprep.subr.mxu0 0.0
    %1052 = vmatpush1.msra.mxu0 0.0
    %1053 = vmatprep.subr.mxu0 0.0
    %1054 = vmatpush1.msra.mxu0 0.0
    %1055 = vmatprep.subr.mxu0 0.0
    %1056 = vmatpush1.msra.mxu0 0.0
    %1057 = vmatprep.subr.mxu0 0.0
    %1058 = vmatpush1.msra.mxu0 0.0
    %1059 = vmatprep.subr.mxu0 0.0
    %1060 = vmatpush1.msra.mxu0 0.0
    %1061 = vmatprep.subr.mxu0 0.0
    %1062 = vmatpush1.msra.mxu0 0.0
    %1063 = vmatprep.subr.mxu0 0.0
    %1064 = vmatpush1.msra.mxu0 %v910
    %1065 = vmatprep.subr.mxu0 0.0
    %1066 = vmatpush2.msra.mxu0 0.0
    %1067 = vmatprep.subr.mxu0 0.0
    %1068 = vmatpush2.msra.mxu0 0.0
    %1069 = vmatprep.subr.mxu0 0.0
    %1070 = vmatpush2.msra.mxu0 0.0
    %1071 = vmatprep.subr.mxu0 0.0
    %1072 = vmatpush2.msra.mxu0 0.0
    %1073 = vmatprep.subr.mxu0 0.0
    %1074 = vmatpush2.msra.mxu0 0.0
    %1075 = vmatprep.subr.mxu0 0.0
    %1076 = vmatpush2.msra.mxu0 0.0
    %1077 = vmatprep.subr.mxu0 0.0
    %1078 = vmatpush2.msra.mxu0 0.0
    %1079 = vmatprep.subr.mxu0 0.0
    %1080 = vmatpush2.msra.mxu0 0.0
    %1081 = vmatprep.subr.mxu0 0.0
    %1082 = vmatpush2.msra.mxu0 0.0
    %1083 = vmatprep.subr.mxu0 0.0
    %1084 = vmatpush2.msra.mxu0 0.0
    %1085 = vmatprep.subr.mxu0 0.0
    %1086 = vmatpush2.msra.mxu0 0.0
    %1087 = vmatprep.subr.mxu0 0.0
    %1088 = vmatpush2.msra.mxu0 0.0
    %1089 = vmatprep.subr.mxu0 0.0
    %1090 = vmatpush2.msra.mxu0 0.0
    %1091 = vmatprep.subr.mxu0 0.0
    %1092 = vmatpush2.msra.mxu0 0.0
    %1093 = vmatprep.subr.mxu0 0.0
    %1094 = vmatpush2.msra.mxu0 0.0
    %1095 = vmatprep.subr.mxu0 0.0
    %1096 = vmatpush2.msra.mxu0 0.0
    %1097 = vmatprep.mubr.f32.mxu0 0.0
    %1098 = vmatmul.mubr.f32.gmra.mxu0 %v933
    %v1099 = vpop.f32.mrf.mxu0
    %v1100 = vadd.f32 %v1032, %v1099
    %v1101 = vpop.f32.mrf.mxu0
    %1102 = vmatprep.mubr.f32.mxu0 0.0
    %1103 = vmatmul.mubr.f32.gmra.mxu0 %v936
    %v1104 = vpop.f32.mrf.mxu0
    %v1105 = vadd.f32 %v1032, %v1104
    %v1106 = vpop.f32.mrf.mxu0
    %1107 = vmatprep.mubr.f32.mxu0 0.0
    %1108 = vmatmul.mubr.f32.gmra.mxu0 %v939
    %v1109 = vpop.f32.mrf.mxu0
    %v1110 = vadd.f32 %v1032, %v1109
    %v1111 = vpop.f32.mrf.mxu0
    %1112 = vmatprep.mubr.f32.mxu0 0.0
    %1113 = vmatmul.mubr.f32.gmra.mxu0 %v942
    %v1114 = vpop.f32.mrf.mxu0
    %v1115 = vadd.f32 %v1032, %v1114
    %v1116 = vpop.f32.mrf.mxu0
    %1117 = vdwg.mxu0
    %v1118 = vlaneseq
    %v1119 = vshrl.u32 %v1118, 7
    %v1120 = vsub.s32 0, %v1119
    %v1121 = vrot.slane %v920, %v1120
    %1122 = vmatprep.subr.mxu0 0.0
    %1123 = vmatpush1.msra.mxu0 0.0
    %1124 = vmatprep.subr.mxu0 0.0
    %1125 = vmatpush1.msra.mxu0 0.0
    %1126 = vmatprep.subr.mxu0 0.0
    %1127 = vmatpush1.msra.mxu0 0.0
    %1128 = vmatprep.subr.mxu0 0.0
    %1129 = vmatpush1.msra.mxu0 0.0
    %1130 = vmatprep.subr.mxu0 0.0
    %1131 = vmatpush1.msra.mxu0 0.0
    %1132 = vmatprep.subr.mxu0 0.0
    %1133 = vmatpush1.msra.mxu0 0.0
    %1134 = vmatprep.subr.mxu0 0.0
    %1135 = vmatpush1.msra.mxu0 0.0
    %1136 = vmatprep.subr.mxu0 0.0
    %1137 = vmatpush1.msra.mxu0 0.0
    %1138 = vmatprep.subr.mxu0 0.0
    %1139 = vmatpush1.msra.mxu0 0.0
    %1140 = vmatprep.subr.mxu0 0.0
    %1141 = vmatpush1.msra.mxu0 0.0
    %1142 = vmatprep.subr.mxu0 0.0
    %1143 = vmatpush1.msra.mxu0 0.0
    %1144 = vmatprep.subr.mxu0 0.0
    %1145 = vmatpush1.msra.mxu0 0.0
    %1146 = vmatprep.subr.mxu0 0.0
    %1147 = vmatpush1.msra.mxu0 0.0
    %1148 = vmatprep.subr.mxu0 0.0
    %1149 = vmatpush1.msra.mxu0 0.0
    %1150 = vmatprep.subr.mxu0 0.0
    %1151 = vmatpush1.msra.mxu0 0.0
    %1152 = vmatprep.subr.mxu0 0.0
    %1153 = vmatpush1.msra.mxu0 %v911
    %1154 = vmatprep.subr.mxu0 0.0
    %1155 = vmatpush2.msra.mxu0 0.0
    %1156 = vmatprep.subr.mxu0 0.0
    %1157 = vmatpush2.msra.mxu0 0.0
    %1158 = vmatprep.subr.mxu0 0.0
    %1159 = vmatpush2.msra.mxu0 0.0
    %1160 = vmatprep.subr.mxu0 0.0
    %1161 = vmatpush2.msra.mxu0 0.0
    %1162 = vmatprep.subr.mxu0 0.0
    %1163 = vmatpush2.msra.mxu0 0.0
    %1164 = vmatprep.subr.mxu0 0.0
    %1165 = vmatpush2.msra.mxu0 0.0
    %1166 = vmatprep.subr.mxu0 0.0
    %1167 = vmatpush2.msra.mxu0 0.0
    %1168 = vmatprep.subr.mxu0 0.0
    %1169 = vmatpush2.msra.mxu0 0.0
    %1170 = vmatprep.subr.mxu0 0.0
    %1171 = vmatpush2.msra.mxu0 0.0
    %1172 = vmatprep.subr.mxu0 0.0
    %1173 = vmatpush2.msra.mxu0 0.0
    %1174 = vmatprep.subr.mxu0 0.0
    %1175 = vmatpush2.msra.mxu0 0.0
    %1176 = vmatprep.subr.mxu0 0.0
    %1177 = vmatpush2.msra.mxu0 0.0
    %1178 = vmatprep.subr.mxu0 0.0
    %1179 = vmatpush2.msra.mxu0 0.0
    %1180 = vmatprep.subr.mxu0 0.0
    %1181 = vmatpush2.msra.mxu0 0.0
    %1182 = vmatprep.subr.mxu0 0.0
    %1183 = vmatpush2.msra.mxu0 0.0
    %1184 = vmatprep.subr.mxu0 0.0
    %1185 = vmatpush2.msra.mxu0 0.0
    %1186 = vmatprep.mubr.f32.mxu0 0.0
    %1187 = vmatmul.mubr.f32.gmra.mxu0 %v933
    %v1188 = vpop.f32.mrf.mxu0
    %v1189 = vadd.f32 %v1121, %v1188
    %v1190 = vpop.f32.mrf.mxu0
    %1191 = vmatprep.mubr.f32.mxu0 0.0
    %1192 = vmatmul.mubr.f32.gmra.mxu0 %v936
    %v1193 = vpop.f32.mrf.mxu0
    %v1194 = vadd.f32 %v1121, %v1193
    %v1195 = vpop.f32.mrf.mxu0
    %1196 = vmatprep.mubr.f32.mxu0 0.0
    %1197 = vmatmul.mubr.f32.gmra.mxu0 %v939
    %v1198 = vpop.f32.mrf.mxu0
    %v1199 = vadd.f32 %v1121, %v1198
    %v1200 = vpop.f32.mrf.mxu0
    %1201 = vmatprep.mubr.f32.mxu0 0.0
    %1202 = vmatmul.mubr.f32.gmra.mxu0 %v942
    %v1203 = vpop.f32.mrf.mxu0
    %v1204 = vadd.f32 %v1121, %v1203
    %v1205 = vpop.f32.mrf.mxu0
    %1206 = vdwg.mxu0
    %v1208 = vsel %vm397, %v1011, 0
    %v1211 = vsel %vm397, %v1016, 0
    %v1214 = vsel %vm397, %v1021, 0
    %v1217 = vsel %vm397, %v1026, 0
    %v1220 = vsel %vm397, %v1100, 0
    %v1223 = vsel %vm397, %v1105, 0
    %v1226 = vsel %vm397, %v1110, 0
    %v1229 = vsel %vm397, %v1115, 0
    %1231 = vmatprep.subr.mxu0 0.0
    %1232 = vmatpush1.xpose.msra.mxu0 0.0
    %1233 = vmatprep.subr.mxu0 0.0
    %1234 = vmatpush1.xpose.msra.mxu0 0.0
    %1235 = vmatprep.subr.mxu0 0.0
    %1236 = vmatpush1.xpose.msra.mxu0 0.0
    %1237 = vmatprep.subr.mxu0 0.0
    %1238 = vmatpush1.xpose.msra.mxu0 0.0
    %1239 = vmatprep.subr.mxu0 0.0
    %1240 = vmatpush1.xpose.msra.mxu0 0.0
    %1241 = vmatprep.subr.mxu0 0.0
    %1242 = vmatpush1.xpose.msra.mxu0 0.0
    %1243 = vmatprep.subr.mxu0 0.0
    %1244 = vmatpush1.xpose.msra.mxu0 0.0
    %1245 = vmatprep.subr.mxu0 0.0
    %1246 = vmatpush1.xpose.msra.mxu0 0.0
    %1247 = vmatprep.subr.mxu0 0.0
    %1248 = vmatpush1.xpose.msra.mxu0 0.0
    %1249 = vmatprep.subr.mxu0 0.0
    %1250 = vmatpush1.xpose.msra.mxu0 0.0
    %1251 = vmatprep.subr.mxu0 0.0
    %1252 = vmatpush1.xpose.msra.mxu0 0.0
    %1253 = vmatprep.subr.mxu0 0.0
    %1254 = vmatpush1.xpose.msra.mxu0 0.0
    %1255 = vmatprep.subr.mxu0 0.0
    %1256 = vmatpush1.xpose.msra.mxu0 %v1229
    %1257 = vmatprep.subr.mxu0 0.0
    %1258 = vmatpush1.xpose.msra.mxu0 %v1226
    %1259 = vmatprep.subr.mxu0 0.0
    %1260 = vmatpush1.xpose.msra.mxu0 %v1223
    %1261 = vmatprep.subr.mxu0 0.0
    %1262 = vmatpush1.xpose.msra.mxu0 %v1220
    %1263 = vmatprep.subr.mxu0 0.0
    %1264 = vmatpush2.xpose.msra.mxu0 0.0
    %1265 = vmatprep.subr.mxu0 0.0
    %1266 = vmatpush2.xpose.msra.mxu0 0.0
    %1267 = vmatprep.subr.mxu0 0.0
    %1268 = vmatpush2.xpose.msra.mxu0 0.0
    %1269 = vmatprep.subr.mxu0 0.0
    %1270 = vmatpush2.xpose.msra.mxu0 0.0
    %1271 = vmatprep.subr.mxu0 0.0
    %1272 = vmatpush2.xpose.msra.mxu0 0.0
    %1273 = vmatprep.subr.mxu0 0.0
    %1274 = vmatpush2.xpose.msra.mxu0 0.0
    %1275 = vmatprep.subr.mxu0 0.0
    %1276 = vmatpush2.xpose.msra.mxu0 0.0
    %1277 = vmatprep.subr.mxu0 0.0
    %1278 = vmatpush2.xpose.msra.mxu0 0.0
    %1279 = vmatprep.subr.mxu0 0.0
    %1280 = vmatpush2.xpose.msra.mxu0 0.0
    %1281 = vmatprep.subr.mxu0 0.0
    %1282 = vmatpush2.xpose.msra.mxu0 0.0
    %1283 = vmatprep.subr.mxu0 0.0
    %1284 = vmatpush2.xpose.msra.mxu0 0.0
    %1285 = vmatprep.subr.mxu0 0.0
    %1286 = vmatpush2.xpose.msra.mxu0 0.0
    %1287 = vmatprep.subr.mxu0 0.0
    %1288 = vmatpush2.xpose.msra.mxu0 0.0
    %1289 = vmatprep.subr.mxu0 0.0
    %1290 = vmatpush2.xpose.msra.mxu0 0.0
    %1291 = vmatprep.subr.mxu0 0.0
    %1292 = vmatpush2.xpose.msra.mxu0 0.0
    %1293 = vmatprep.subr.mxu0 0.0
    %1294 = vmatpush2.xpose.msra.mxu0 0.0
    %1295 = vmatprep.mubr.f32.mxu0 0.0
    %1296 = vmatmul.mubr.f32.gmra.mxu0 %v1208
    %v1297 = vpop.f32.mrf.mxu0
    %v1298 = vadd.f32 0.0, %v1297
    %v1299 = vpop.f32.mrf.mxu0
    %1300 = vmatprep.mubr.f32.mxu0 0.0
    %1301 = vmatmul.mubr.f32.gmra.mxu0 %v1211
    %v1302 = vpop.f32.mrf.mxu0
    %v1303 = vadd.f32 0.0, %v1302
    %v1304 = vpop.f32.mrf.mxu0
    %1305 = vmatprep.mubr.f32.mxu0 0.0
    %1306 = vmatmul.mubr.f32.gmra.mxu0 %v1214
    %v1307 = vpop.f32.mrf.mxu0
    %v1308 = vadd.f32 0.0, %v1307
    %v1309 = vpop.f32.mrf.mxu0
    %1310 = vmatprep.mubr.f32.mxu0 0.0
    %1311 = vmatmul.mubr.f32.gmra.mxu0 %v1217
    %v1312 = vpop.f32.mrf.mxu0
    %v1313 = vadd.f32 0.0, %v1312
    %v1314 = vpop.f32.mrf.mxu0
    %1315 = vdwg.mxu0
    %v1316 = vmul.f32 %v1298, 0.35355338
    %v1317 = vmul.f32 %v1303, 0.35355338
    %v1318 = vmul.f32 %v1308, 0.35355338
    %v1319 = vmul.f32 %v1313, 0.35355338
    %1320 = vrot.lane.b32.xlu0 %v394, 16
    %v1321 = vpop.permute.xlu0 %1320
    %v1322 = vsel %vm46, %v393, %v1321
    %vm1323 = vcmp.eq.s32.totalorder %v1322, 0
    %vm1324 = vcmp.eq.s32.totalorder %v1322, 1
    %v1325 = vsel %vm1323, %v1316, -1e+30
    %v1326 = vsel %vm1323, %v1317, -1e+30
    %v1327 = vsel %vm1324, %v1318, -1e+30
    %v1328 = vsel %vm1324, %v1319, -1e+30
    %vm1329 = vcmask 261120
    %v1330 = vsel %vm1329, %v1325, -inf
    %1331 = vmax.xlane.f32.xlu0 %v1330
    %v1332 = vpop.xlane.xlu0 %1331
    %v1333 = vsel %vm1329, %v1326, -inf
    %1334 = vmax.xlane.f32.xlu0 %v1333
    %v1335 = vpop.xlane.xlu0 %1334
    %v1336 = vsel %vm1329, %v1327, -inf
    %1337 = vmax.xlane.f32.xlu0 %v1336
    %v1338 = vpop.xlane.xlu0 %1337
    %v1339 = vsel %vm1329, %v1328, -inf
    %1340 = vmax.xlane.f32.xlu0 %v1339
    %v1341 = vpop.xlane.xlu0 %1340
    %v1342 = vsub.f32 %v1325, %v1332
    %v1343 = vsub.f32 %v1326, %v1335
    %v1344 = vsub.f32 %v1327, %v1338
    %v1345 = vsub.f32 %v1328, %v1341
    %v1346 = vmul.f32 %v1342, 1.442695
    %v1347 = vpow.pop %v1346
    %v1348 = vmul.f32 %v1343, 1.442695
    %v1349 = vpow.pop %v1348
    %v1350 = vmul.f32 %v1344, 1.442695
    %v1351 = vpow.pop %v1350
    %v1352 = vmul.f32 %v1345, 1.442695
    %v1353 = vpow.pop %v1352
    %v1354 = vsel %vm1329, %v1347, 0.0
    %1355 = vadd.xlane.f32.xlu0 %v1354
    %v1356 = vpop.xlane.xlu0 %1355
    %v1357 = vsel %vm1329, %v1349, 0.0
    %1358 = vadd.xlane.f32.xlu0 %v1357
    %v1359 = vpop.xlane.xlu0 %1358
    %v1360 = vsel %vm1329, %v1351, 0.0
    %1361 = vadd.xlane.f32.xlu0 %v1360
    %v1362 = vpop.xlane.xlu0 %1361
    %v1363 = vsel %vm1329, %v1353, 0.0
    %1364 = vadd.xlane.f32.xlu0 %v1363
    %v1365 = vpop.xlane.xlu0 %1364
    %v1366 = vrcp.pop %v1356
    %v1367 = vmul.f32 %v1347, %v1366
    %v1368 = vrcp.pop %v1359
    %v1369 = vmul.f32 %v1349, %v1368
    %v1370 = vrcp.pop %v1362
    %v1371 = vmul.f32 %v1351, %v1370
    %v1372 = vrcp.pop %v1365
    %v1373 = vmul.f32 %v1353, %v1372
    %v1375 = vsel %vm1329, %v1367, 0
    %v1378 = vsel %vm1329, %v1369, 0
    %v1381 = vsel %vm1329, %v1371, 0
    %v1384 = vsel %vm1329, %v1373, 0
    %1386 = vmatprep.subr.mxu0 0.0
    %1387 = vmatpush1.msra.mxu0 0.0
    %1388 = vmatprep.subr.mxu0 0.0
    %1389 = vmatpush1.msra.mxu0 0.0
    %1390 = vmatprep.subr.mxu0 0.0
    %1391 = vmatpush1.msra.mxu0 0.0
    %1392 = vmatprep.subr.mxu0 0.0
    %1393 = vmatpush1.msra.mxu0 0.0
    %1394 = vmatprep.subr.mxu0 0.0
    %1395 = vmatpush1.msra.mxu0 0.0
    %1396 = vmatprep.subr.mxu0 0.0
    %1397 = vmatpush1.msra.mxu0 0.0
    %1398 = vmatprep.subr.mxu0 0.0
    %1399 = vmatpush1.msra.mxu0 0.0
    %1400 = vmatprep.subr.mxu0 0.0
    %1401 = vmatpush1.msra.mxu0 0.0
    %1402 = vmatprep.subr.mxu0 0.0
    %1403 = vmatpush1.msra.mxu0 0.0
    %1404 = vmatprep.subr.mxu0 0.0
    %1405 = vmatpush1.msra.mxu0 0.0
    %1406 = vmatprep.subr.mxu0 0.0
    %1407 = vmatpush1.msra.mxu0 0.0
    %1408 = vmatprep.subr.mxu0 0.0
    %1409 = vmatpush1.msra.mxu0 0.0
    %1410 = vmatprep.subr.mxu0 0.0
    %1411 = vmatpush1.msra.mxu0 %v1204
    %1412 = vmatprep.subr.mxu0 0.0
    %1413 = vmatpush1.msra.mxu0 %v1199
    %1414 = vmatprep.subr.mxu0 0.0
    %1415 = vmatpush1.msra.mxu0 %v1194
    %1416 = vmatprep.subr.mxu0 0.0
    %1417 = vmatpush1.msra.mxu0 %v1189
    %1418 = vmatprep.subr.mxu0 0.0
    %1419 = vmatpush2.msra.mxu0 0.0
    %1420 = vmatprep.subr.mxu0 0.0
    %1421 = vmatpush2.msra.mxu0 0.0
    %1422 = vmatprep.subr.mxu0 0.0
    %1423 = vmatpush2.msra.mxu0 0.0
    %1424 = vmatprep.subr.mxu0 0.0
    %1425 = vmatpush2.msra.mxu0 0.0
    %1426 = vmatprep.subr.mxu0 0.0
    %1427 = vmatpush2.msra.mxu0 0.0
    %1428 = vmatprep.subr.mxu0 0.0
    %1429 = vmatpush2.msra.mxu0 0.0
    %1430 = vmatprep.subr.mxu0 0.0
    %1431 = vmatpush2.msra.mxu0 0.0
    %1432 = vmatprep.subr.mxu0 0.0
    %1433 = vmatpush2.msra.mxu0 0.0
    %1434 = vmatprep.subr.mxu0 0.0
    %1435 = vmatpush2.msra.mxu0 0.0
    %1436 = vmatprep.subr.mxu0 0.0
    %1437 = vmatpush2.msra.mxu0 0.0
    %1438 = vmatprep.subr.mxu0 0.0
    %1439 = vmatpush2.msra.mxu0 0.0
    %1440 = vmatprep.subr.mxu0 0.0
    %1441 = vmatpush2.msra.mxu0 0.0
    %1442 = vmatprep.subr.mxu0 0.0
    %1443 = vmatpush2.msra.mxu0 0.0
    %1444 = vmatprep.subr.mxu0 0.0
    %1445 = vmatpush2.msra.mxu0 0.0
    %1446 = vmatprep.subr.mxu0 0.0
    %1447 = vmatpush2.msra.mxu0 0.0
    %1448 = vmatprep.subr.mxu0 0.0
    %1449 = vmatpush2.msra.mxu0 0.0
    %1450 = vmatprep.mubr.f32.mxu0 0.0
    %1451 = vmatmul.mubr.f32.gmra.mxu0 %v1375
    %v1452 = vpop.f32.mrf.mxu0
    %v1453 = vadd.f32 0.0, %v1452
    %v1454 = vpop.f32.mrf.mxu0
    %1455 = vmatprep.mubr.f32.mxu0 0.0
    %1456 = vmatmul.mubr.f32.gmra.mxu0 %v1378
    %v1457 = vpop.f32.mrf.mxu0
    %v1458 = vadd.f32 0.0, %v1457
    %v1459 = vpop.f32.mrf.mxu0
    %1460 = vmatprep.mubr.f32.mxu0 0.0
    %1461 = vmatmul.mubr.f32.gmra.mxu0 %v1381
    %v1462 = vpop.f32.mrf.mxu0
    %v1463 = vadd.f32 0.0, %v1462
    %v1464 = vpop.f32.mrf.mxu0
    %1465 = vmatprep.mubr.f32.mxu0 0.0
    %1466 = vmatmul.mubr.f32.gmra.mxu0 %v1384
    %v1467 = vpop.f32.mrf.mxu0
    %v1468 = vadd.f32 0.0, %v1467
    %v1469 = vpop.f32.mrf.mxu0
    %1470 = vdwg.mxu0
    %v1471 = vlaneseq
    %v1472 = vshrl.u32 %v1471, 7
    %v1473 = vsub.s32 0, %v1472
    %v1474 = vrot.slane %v921, %v1473
    %v1476 = vsel %vm397, %v1453, 0
    %v1479 = vsel %vm397, %v1458, 0
    %v1482 = vsel %vm397, %v1463, 0
    %v1485 = vsel %vm397, %v1468, 0
    %1487 = vmatprep.subr.mxu0 0.0
    %1488 = vmatpush1.msra.mxu0 0.0
    %1489 = vmatprep.subr.mxu0 0.0
    %1490 = vmatpush1.msra.mxu0 0.0
    %1491 = vmatprep.subr.mxu0 0.0
    %1492 = vmatpush1.msra.mxu0 0.0
    %1493 = vmatprep.subr.mxu0 0.0
    %1494 = vmatpush1.msra.mxu0 0.0
    %1495 = vmatprep.subr.mxu0 0.0
    %1496 = vmatpush1.msra.mxu0 0.0
    %1497 = vmatprep.subr.mxu0 0.0
    %1498 = vmatpush1.msra.mxu0 0.0
    %1499 = vmatprep.subr.mxu0 0.0
    %1500 = vmatpush1.msra.mxu0 0.0
    %1501 = vmatprep.subr.mxu0 0.0
    %1502 = vmatpush1.msra.mxu0 0.0
    %1503 = vmatprep.subr.mxu0 0.0
    %1504 = vmatpush1.msra.mxu0 0.0
    %1505 = vmatprep.subr.mxu0 0.0
    %1506 = vmatpush1.msra.mxu0 0.0
    %1507 = vmatprep.subr.mxu0 0.0
    %1508 = vmatpush1.msra.mxu0 0.0
    %1509 = vmatprep.subr.mxu0 0.0
    %1510 = vmatpush1.msra.mxu0 0.0
    %1511 = vmatprep.subr.mxu0 0.0
    %1512 = vmatpush1.msra.mxu0 0.0
    %1513 = vmatprep.subr.mxu0 0.0
    %1514 = vmatpush1.msra.mxu0 0.0
    %1515 = vmatprep.subr.mxu0 0.0
    %1516 = vmatpush1.msra.mxu0 0.0
    %1517 = vmatprep.subr.mxu0 0.0
    %1518 = vmatpush1.msra.mxu0 %v912
    %1519 = vmatprep.subr.mxu0 0.0
    %1520 = vmatpush2.msra.mxu0 0.0
    %1521 = vmatprep.subr.mxu0 0.0
    %1522 = vmatpush2.msra.mxu0 0.0
    %1523 = vmatprep.subr.mxu0 0.0
    %1524 = vmatpush2.msra.mxu0 0.0
    %1525 = vmatprep.subr.mxu0 0.0
    %1526 = vmatpush2.msra.mxu0 0.0
    %1527 = vmatprep.subr.mxu0 0.0
    %1528 = vmatpush2.msra.mxu0 0.0
    %1529 = vmatprep.subr.mxu0 0.0
    %1530 = vmatpush2.msra.mxu0 0.0
    %1531 = vmatprep.subr.mxu0 0.0
    %1532 = vmatpush2.msra.mxu0 0.0
    %1533 = vmatprep.subr.mxu0 0.0
    %1534 = vmatpush2.msra.mxu0 0.0
    %1535 = vmatprep.subr.mxu0 0.0
    %1536 = vmatpush2.msra.mxu0 0.0
    %1537 = vmatprep.subr.mxu0 0.0
    %1538 = vmatpush2.msra.mxu0 0.0
    %1539 = vmatprep.subr.mxu0 0.0
    %1540 = vmatpush2.msra.mxu0 0.0
    %1541 = vmatprep.subr.mxu0 0.0
    %1542 = vmatpush2.msra.mxu0 0.0
    %1543 = vmatprep.subr.mxu0 0.0
    %1544 = vmatpush2.msra.mxu0 0.0
    %1545 = vmatprep.subr.mxu0 0.0
    %1546 = vmatpush2.msra.mxu0 0.0
    %1547 = vmatprep.subr.mxu0 0.0
    %1548 = vmatpush2.msra.mxu0 0.0
    %1549 = vmatprep.subr.mxu0 0.0
    %1550 = vmatpush2.msra.mxu0 0.0
    %1551 = vmatprep.mubr.f32.mxu0 0.0
    %1552 = vmatmul.mubr.f32.gmra.mxu0 %v1476
    %v1553 = vpop.f32.mrf.mxu0
    %v1554 = vadd.f32 %v1474, %v1553
    %v1555 = vpop.f32.mrf.mxu0
    %1556 = vmatprep.mubr.f32.mxu0 0.0
    %1557 = vmatmul.mubr.f32.gmra.mxu0 %v1479
    %v1558 = vpop.f32.mrf.mxu0
    %v1559 = vadd.f32 %v1474, %v1558
    %v1560 = vpop.f32.mrf.mxu0
    %1561 = vmatprep.mubr.f32.mxu0 0.0
    %1562 = vmatmul.mubr.f32.gmra.mxu0 %v1482
    %v1563 = vpop.f32.mrf.mxu0
    %v1564 = vadd.f32 %v1474, %v1563
    %v1565 = vpop.f32.mrf.mxu0
    %1566 = vmatprep.mubr.f32.mxu0 0.0
    %1567 = vmatmul.mubr.f32.gmra.mxu0 %v1485
    %v1568 = vpop.f32.mrf.mxu0
    %v1569 = vadd.f32 %v1474, %v1568
    %v1570 = vpop.f32.mrf.mxu0
    %1571 = vdwg.mxu0
    %v1572 = vadd.f32 %v861, %v1554
    %v1573 = vadd.f32 %v862, %v1559
    %v1574 = vadd.f32 %v893, %v1564
    %v1575 = vadd.f32 %v894, %v1569
    %v1576 = vsel %vm397, %v1572, 0.0
    %1577 = vadd.xlane.f32.xlu0 %v1576
    %v1578 = vpop.xlane.xlu0 %1577
    %v1579 = vsel %vm397, %v1573, 0.0
    %1580 = vadd.xlane.f32.xlu0 %v1579
    %v1581 = vpop.xlane.xlu0 %1580
    %v1582 = vsel %vm397, %v1574, 0.0
    %1583 = vadd.xlane.f32.xlu0 %v1582
    %v1584 = vpop.xlane.xlu0 %1583
    %v1585 = vsel %vm397, %v1575, 0.0
    %1586 = vadd.xlane.f32.xlu0 %v1585
    %v1587 = vpop.xlane.xlu0 %1586
    %v1588 = vrcp.pop 8.0
    %v1589 = vmul.f32 %v1578, %v1588
    %v1590 = vmul.f32 %v1581, %v1588
    %v1591 = vmul.f32 %v1584, %v1588
    %v1592 = vmul.f32 %v1587, %v1588
    %v1593 = vsub.f32 %v1572, %v1589
    %v1594 = vsub.f32 %v1573, %v1590
    %v1595 = vsub.f32 %v1574, %v1591
    %v1596 = vsub.f32 %v1575, %v1592
    %v1597 = vmul.f32 %v1593, %v1593
    %v1598 = vmul.f32 %v1594, %v1594
    %v1599 = vmul.f32 %v1595, %v1595
    %v1600 = vmul.f32 %v1596, %v1596
    %v1601 = vsel %vm397, %v1597, 0.0
    %1602 = vadd.xlane.f32.xlu0 %v1601
    %v1603 = vpop.xlane.xlu0 %1602
    %v1604 = vsel %vm397, %v1598, 0.0
    %1605 = vadd.xlane.f32.xlu0 %v1604
    %v1606 = vpop.xlane.xlu0 %1605
    %v1607 = vsel %vm397, %v1599, 0.0
    %1608 = vadd.xlane.f32.xlu0 %v1607
    %v1609 = vpop.xlane.xlu0 %1608
    %v1610 = vsel %vm397, %v1600, 0.0
    %1611 = vadd.xlane.f32.xlu0 %v1610
    %v1612 = vpop.xlane.xlu0 %1611
    %v1613 = vmul.f32 %v1603, %v1588
    %v1614 = vmul.f32 %v1606, %v1588
    %v1615 = vmul.f32 %v1609, %v1588
    %v1616 = vmul.f32 %v1612, %v1588
    %v1617 = vadd.f32 %v1613, 1e-05
    %v1618 = vadd.f32 %v1614, 1e-05
    %v1619 = vadd.f32 %v1615, 1e-05
    %v1620 = vadd.f32 %v1616, 1e-05
    %v1621 = vrsqrt.pop %v1617
    %v1622 = vrsqrt.pop %v1618
    %v1623 = vrsqrt.pop %v1619
    %v1624 = vrsqrt.pop %v1620
    %v1625 = vmul.f32 %v1593, %v1621
    %v1626 = vmul.f32 %v1594, %v1622
    %v1627 = vmul.f32 %v1595, %v1623
    %v1628 = vmul.f32 %v1596, %v1624
    %v1629 = vlaneseq
    %v1630 = vshrl.u32 %v1629, 7
    %v1631 = vsub.s32 0, %v1630
    %v1632 = vrot.slane %v924, %v1631
    %v1633 = vmul.f32 %v1625, %v1632
    %v1634 = vmul.f32 %v1626, %v1632
    %v1635 = vmul.f32 %v1627, %v1632
    %v1636 = vmul.f32 %v1628, %v1632
    %v1637 = vlaneseq
    %v1638 = vshrl.u32 %v1637, 7
    %v1639 = vsub.s32 0, %v1638
    %v1640 = vrot.slane %v925, %v1639
    %v1641 = vadd.f32 %v1633, %v1640
    %v1642 = vadd.f32 %v1634, %v1640
    %v1643 = vadd.f32 %v1635, %v1640
    %v1644 = vadd.f32 %v1636, %v1640
    %v1645 = vlaneseq
    %v1646 = vshrl.u32 %v1645, 7
    %v1647 = vsub.s32 0, %v1646
    %v1648 = vrot.slane %v922, %v1647
    %v1650 = vsel %vm397, %v1641, 0
    %v1653 = vsel %vm397, %v1642, 0
    %v1656 = vsel %vm397, %v1643, 0
    %v1659 = vsel %vm397, %v1644, 0
    %1661 = vmatprep.subr.mxu0 0.0
    %1662 = vmatpush1.msra.mxu0 0.0
    %1663 = vmatprep.subr.mxu0 0.0
    %1664 = vmatpush1.msra.mxu0 0.0
    %1665 = vmatprep.subr.mxu0 0.0
    %1666 = vmatpush1.msra.mxu0 0.0
    %1667 = vmatprep.subr.mxu0 0.0
    %1668 = vmatpush1.msra.mxu0 0.0
    %1669 = vmatprep.subr.mxu0 0.0
    %1670 = vmatpush1.msra.mxu0 0.0
    %1671 = vmatprep.subr.mxu0 0.0
    %1672 = vmatpush1.msra.mxu0 0.0
    %1673 = vmatprep.subr.mxu0 0.0
    %1674 = vmatpush1.msra.mxu0 0.0
    %1675 = vmatprep.subr.mxu0 0.0
    %1676 = vmatpush1.msra.mxu0 0.0
    %1677 = vmatprep.subr.mxu0 0.0
    %1678 = vmatpush1.msra.mxu0 0.0
    %1679 = vmatprep.subr.mxu0 0.0
    %1680 = vmatpush1.msra.mxu0 0.0
    %1681 = vmatprep.subr.mxu0 0.0
    %1682 = vmatpush1.msra.mxu0 0.0
    %1683 = vmatprep.subr.mxu0 0.0
    %1684 = vmatpush1.msra.mxu0 0.0
    %1685 = vmatprep.subr.mxu0 0.0
    %1686 = vmatpush1.msra.mxu0 0.0
    %1687 = vmatprep.subr.mxu0 0.0
    %1688 = vmatpush1.msra.mxu0 0.0
    %1689 = vmatprep.subr.mxu0 0.0
    %1690 = vmatpush1.msra.mxu0 0.0
    %1691 = vmatprep.subr.mxu0 0.0
    %1692 = vmatpush1.msra.mxu0 %v913
    %1693 = vmatprep.subr.mxu0 0.0
    %1694 = vmatpush2.msra.mxu0 0.0
    %1695 = vmatprep.subr.mxu0 0.0
    %1696 = vmatpush2.msra.mxu0 0.0
    %1697 = vmatprep.subr.mxu0 0.0
    %1698 = vmatpush2.msra.mxu0 0.0
    %1699 = vmatprep.subr.mxu0 0.0
    %1700 = vmatpush2.msra.mxu0 0.0
    %1701 = vmatprep.subr.mxu0 0.0
    %1702 = vmatpush2.msra.mxu0 0.0
    %1703 = vmatprep.subr.mxu0 0.0
    %1704 = vmatpush2.msra.mxu0 0.0
    %1705 = vmatprep.subr.mxu0 0.0
    %1706 = vmatpush2.msra.mxu0 0.0
    %1707 = vmatprep.subr.mxu0 0.0
    %1708 = vmatpush2.msra.mxu0 0.0
    %1709 = vmatprep.subr.mxu0 0.0
    %1710 = vmatpush2.msra.mxu0 0.0
    %1711 = vmatprep.subr.mxu0 0.0
    %1712 = vmatpush2.msra.mxu0 0.0
    %1713 = vmatprep.subr.mxu0 0.0
    %1714 = vmatpush2.msra.mxu0 0.0
    %1715 = vmatprep.subr.mxu0 0.0
    %1716 = vmatpush2.msra.mxu0 0.0
    %1717 = vmatprep.subr.mxu0 0.0
    %1718 = vmatpush2.msra.mxu0 0.0
    %1719 = vmatprep.subr.mxu0 0.0
    %1720 = vmatpush2.msra.mxu0 0.0
    %1721 = vmatprep.subr.mxu0 0.0
    %1722 = vmatpush2.msra.mxu0 0.0
    %1723 = vmatprep.subr.mxu0 0.0
    %1724 = vmatpush2.msra.mxu0 0.0
    %1725 = vmatprep.mubr.f32.mxu0 0.0
    %1726 = vmatmul.mubr.f32.gmra.mxu0 %v1650
    %v1727 = vpop.f32.mrf.mxu0
    %v1728 = vadd.f32 %v1648, %v1727
    %v1729 = vpop.f32.mrf.mxu0
    %1730 = vmatprep.mubr.f32.mxu0 0.0
    %1731 = vmatmul.mubr.f32.gmra.mxu0 %v1653
    %v1732 = vpop.f32.mrf.mxu0
    %v1733 = vadd.f32 %v1648, %v1732
    %v1734 = vpop.f32.mrf.mxu0
    %1735 = vmatprep.mubr.f32.mxu0 0.0
    %1736 = vmatmul.mubr.f32.gmra.mxu0 %v1656
    %v1737 = vpop.f32.mrf.mxu0
    %v1738 = vadd.f32 %v1648, %v1737
    %v1739 = vpop.f32.mrf.mxu0
    %1740 = vmatprep.mubr.f32.mxu0 0.0
    %1741 = vmatmul.mubr.f32.gmra.mxu0 %v1659
    %v1742 = vpop.f32.mrf.mxu0
    %v1743 = vadd.f32 %v1648, %v1742
    %v1744 = vpop.f32.mrf.mxu0
    %1745 = vdwg.mxu0
    %v1746 = vmax.f32 %v1728, 0.0
    %v1747 = vmax.f32 %v1733, 0.0
    %v1748 = vmax.f32 %v1738, 0.0
    %v1749 = vmax.f32 %v1743, 0.0
    %v1750 = vlaneseq
    %v1751 = vshrl.u32 %v1750, 7
    %v1752 = vsub.s32 0, %v1751
    %v1753 = vrot.slane %v923, %v1752
    %v1755 = vsel %vm1329, %v1746, 0
    %v1758 = vsel %vm1329, %v1747, 0
    %v1761 = vsel %vm1329, %v1748, 0
    %v1764 = vsel %vm1329, %v1749, 0
    %1766 = vmatprep.subr.mxu0 0.0
    %1767 = vmatpush1.msra.mxu0 0.0
    %1768 = vmatprep.subr.mxu0 0.0
    %1769 = vmatpush1.msra.mxu0 0.0
    %1770 = vmatprep.subr.mxu0 0.0
    %1771 = vmatpush1.msra.mxu0 0.0
    %1772 = vmatprep.subr.mxu0 0.0
    %1773 = vmatpush1.msra.mxu0 0.0
    %1774 = vmatprep.subr.mxu0 0.0
    %1775 = vmatpush1.msra.mxu0 0.0
    %1776 = vmatprep.subr.mxu0 0.0
    %1777 = vmatpush1.msra.mxu0 0.0
    %1778 = vmatprep.subr.mxu0 0.0
    %1779 = vmatpush1.msra.mxu0 0.0
    %1780 = vmatprep.subr.mxu0 0.0
    %1781 = vmatpush1.msra.mxu0 0.0
    %1782 = vmatprep.subr.mxu0 0.0
    %1783 = vmatpush1.msra.mxu0 0.0
    %1784 = vmatprep.subr.mxu0 0.0
    %1785 = vmatpush1.msra.mxu0 0.0
    %1786 = vmatprep.subr.mxu0 0.0
    %1787 = vmatpush1.msra.mxu0 0.0
    %1788 = vmatprep.subr.mxu0 0.0
    %1789 = vmatpush1.msra.mxu0 0.0
    %1790 = vmatprep.subr.mxu0 0.0
    %1791 = vmatpush1.msra.mxu0 %v917
    %1792 = vmatprep.subr.mxu0 0.0
    %1793 = vmatpush1.msra.mxu0 %v916
    %1794 = vmatprep.subr.mxu0 0.0
    %1795 = vmatpush1.msra.mxu0 %v915
    %1796 = vmatprep.subr.mxu0 0.0
    %1797 = vmatpush1.msra.mxu0 %v914
    %1798 = vmatprep.subr.mxu0 0.0
    %1799 = vmatpush2.msra.mxu0 0.0
    %1800 = vmatprep.subr.mxu0 0.0
    %1801 = vmatpush2.msra.mxu0 0.0
    %1802 = vmatprep.subr.mxu0 0.0
    %1803 = vmatpush2.msra.mxu0 0.0
    %1804 = vmatprep.subr.mxu0 0.0
    %1805 = vmatpush2.msra.mxu0 0.0
    %1806 = vmatprep.subr.mxu0 0.0
    %1807 = vmatpush2.msra.mxu0 0.0
    %1808 = vmatprep.subr.mxu0 0.0
    %1809 = vmatpush2.msra.mxu0 0.0
    %1810 = vmatprep.subr.mxu0 0.0
    %1811 = vmatpush2.msra.mxu0 0.0
    %1812 = vmatprep.subr.mxu0 0.0
    %1813 = vmatpush2.msra.mxu0 0.0
    %1814 = vmatprep.subr.mxu0 0.0
    %1815 = vmatpush2.msra.mxu0 0.0
    %1816 = vmatprep.subr.mxu0 0.0
    %1817 = vmatpush2.msra.mxu0 0.0
    %1818 = vmatprep.subr.mxu0 0.0
    %1819 = vmatpush2.msra.mxu0 0.0
    %1820 = vmatprep.subr.mxu0 0.0
    %1821 = vmatpush2.msra.mxu0 0.0
    %1822 = vmatprep.subr.mxu0 0.0
    %1823 = vmatpush2.msra.mxu0 0.0
    %1824 = vmatprep.subr.mxu0 0.0
    %1825 = vmatpush2.msra.mxu0 0.0
    %1826 = vmatprep.subr.mxu0 0.0
    %1827 = vmatpush2.msra.mxu0 0.0
    %1828 = vmatprep.subr.mxu0 0.0
    %1829 = vmatpush2.msra.mxu0 0.0
    %1830 = vmatprep.mubr.f32.mxu0 0.0
    %1831 = vmatmul.mubr.f32.gmra.mxu0 %v1755
    %v1832 = vpop.f32.mrf.mxu0
    %v1833 = vadd.f32 %v1753, %v1832
    %v1834 = vpop.f32.mrf.mxu0
    %1835 = vmatprep.mubr.f32.mxu0 0.0
    %1836 = vmatmul.mubr.f32.gmra.mxu0 %v1758
    %v1837 = vpop.f32.mrf.mxu0
    %v1838 = vadd.f32 %v1753, %v1837
    %v1839 = vpop.f32.mrf.mxu0
    %1840 = vmatprep.mubr.f32.mxu0 0.0
    %1841 = vmatmul.mubr.f32.gmra.mxu0 %v1761
    %v1842 = vpop.f32.mrf.mxu0
    %v1843 = vadd.f32 %v1753, %v1842
    %v1844 = vpop.f32.mrf.mxu0
    %1845 = vmatprep.mubr.f32.mxu0 0.0
    %1846 = vmatmul.mubr.f32.gmra.mxu0 %v1764
    %v1847 = vpop.f32.mrf.mxu0
    %v1848 = vadd.f32 %v1753, %v1847
    %v1849 = vpop.f32.mrf.mxu0
    %1850 = vdwg.mxu0
    %v1851 = vadd.f32 %v1641, %v1833
    %v1852 = vadd.f32 %v1642, %v1838
    %v1853 = vadd.f32 %v1643, %v1843
    %v1854 = vadd.f32 %v1644, %v1848
    %v1855 = vsel %vm397, %v1851, 0.0
    %1856 = vadd.xlane.f32.xlu0 %v1855
    %v1857 = vpop.xlane.xlu0 %1856
    %v1858 = vsel %vm397, %v1852, 0.0
    %1859 = vadd.xlane.f32.xlu0 %v1858
    %v1860 = vpop.xlane.xlu0 %1859
    %v1861 = vsel %vm397, %v1853, 0.0
    %1862 = vadd.xlane.f32.xlu0 %v1861
    %v1863 = vpop.xlane.xlu0 %1862
    %v1864 = vsel %vm397, %v1854, 0.0
    %1865 = vadd.xlane.f32.xlu0 %v1864
    %v1866 = vpop.xlane.xlu0 %1865
    %v1867 = vmul.f32 %v1857, %v1588
    %v1868 = vmul.f32 %v1860, %v1588
    %v1869 = vmul.f32 %v1863, %v1588
    %v1870 = vmul.f32 %v1866, %v1588
    %v1871 = vsub.f32 %v1851, %v1867
    %v1872 = vsub.f32 %v1852, %v1868
    %v1873 = vsub.f32 %v1853, %v1869
    %v1874 = vsub.f32 %v1854, %v1870
    %v1875 = vmul.f32 %v1871, %v1871
    %v1876 = vmul.f32 %v1872, %v1872
    %v1877 = vmul.f32 %v1873, %v1873
    %v1878 = vmul.f32 %v1874, %v1874
    %v1879 = vsel %vm397, %v1875, 0.0
    %1880 = vadd.xlane.f32.xlu0 %v1879
    %v1881 = vpop.xlane.xlu0 %1880
    %v1882 = vsel %vm397, %v1876, 0.0
    %1883 = vadd.xlane.f32.xlu0 %v1882
    %v1884 = vpop.xlane.xlu0 %1883
    %v1885 = vsel %vm397, %v1877, 0.0
    %1886 = vadd.xlane.f32.xlu0 %v1885
    %v1887 = vpop.xlane.xlu0 %1886
    %v1888 = vsel %vm397, %v1878, 0.0
    %1889 = vadd.xlane.f32.xlu0 %v1888
    %v1890 = vpop.xlane.xlu0 %1889
    %v1891 = vmul.f32 %v1881, %v1588
    %v1892 = vmul.f32 %v1884, %v1588
    %v1893 = vmul.f32 %v1887, %v1588
    %v1894 = vmul.f32 %v1890, %v1588
    %v1895 = vadd.f32 %v1891, 1e-05
    %v1896 = vadd.f32 %v1892, 1e-05
    %v1897 = vadd.f32 %v1893, 1e-05
    %v1898 = vadd.f32 %v1894, 1e-05
    %v1899 = vrsqrt.pop %v1895
    %v1900 = vrsqrt.pop %v1896
    %v1901 = vrsqrt.pop %v1897
    %v1902 = vrsqrt.pop %v1898
    %v1903 = vmul.f32 %v1871, %v1899
    %v1904 = vmul.f32 %v1872, %v1900
    %v1905 = vmul.f32 %v1873, %v1901
    %v1906 = vmul.f32 %v1874, %v1902
    %v1907 = vlaneseq
    %v1908 = vshrl.u32 %v1907, 7
    %v1909 = vsub.s32 0, %v1908
    %v1910 = vrot.slane %v926, %v1909
    %v1911 = vmul.f32 %v1903, %v1910
    %v1912 = vmul.f32 %v1904, %v1910
    %v1913 = vmul.f32 %v1905, %v1910
    %v1914 = vmul.f32 %v1906, %v1910
    %v1915 = vlaneseq
    %v1916 = vshrl.u32 %v1915, 7
    %v1917 = vsub.s32 0, %v1916
    %v1918 = vrot.slane %v927, %v1917
    %v1919 = vadd.f32 %v1911, %v1918
    %v1920 = vadd.f32 %v1912, %v1918
    %v1921 = vadd.f32 %v1913, %v1918
    %v1922 = vadd.f32 %v1914, %v1918
    %1923 = vxpose.xlu0.b32.start [1/16] %v1919, 128
    %1924 = vxpose.xlu0.b32.cont [2/16] %v1920, 128
    %1925 = vxpose.xlu0.b32.cont [3/16] 0.0, 128
    %1926 = vxpose.xlu0.b32.cont [4/16] 0.0, 128
    %1927 = vxpose.xlu0.b32.cont [5/16] 0.0, 128
    %1928 = vxpose.xlu0.b32.cont [6/16] 0.0, 128
    %1929 = vxpose.xlu0.b32.cont [7/16] 0.0, 128
    %1930 = vxpose.xlu0.b32.cont [8/16] 0.0, 128
    %1931 = vxpose.xlu0.b32.cont [9/16] 0.0, 128
    %1932 = vxpose.xlu0.b32.cont [10/16] 0.0, 128
    %1933 = vxpose.xlu0.b32.cont [11/16] 0.0, 128
    %1934 = vxpose.xlu0.b32.cont [12/16] 0.0, 128
    %1935 = vxpose.xlu0.b32.cont [13/16] 0.0, 128
    %1936 = vxpose.xlu0.b32.cont [14/16] 0.0, 128
    %1937 = vxpose.xlu0.b32.cont [15/16] 0.0, 128
    %1938 = vxpose.xlu0.b32.end [16/16] 0.0, 128
    %v1939 = vpop.trf.xlu0
    %v1940 = vpop.trf.xlu0
    %v1941 = vpop.trf.xlu0
    %v1942 = vpop.trf.xlu0
    %v1943 = vpop.trf.xlu0
    %v1944 = vpop.trf.xlu0
    %v1945 = vpop.trf.xlu0
    %v1946 = vpop.trf.xlu0
    %v1947 = vpop.trf.xlu0
    %v1948 = vpop.trf.xlu0
    %v1949 = vpop.trf.xlu0
    %v1950 = vpop.trf.xlu0
    %v1951 = vpop.trf.xlu0
    %v1952 = vpop.trf.xlu0
    %v1953 = vpop.trf.xlu0
    %v1954 = vpop.trf.xlu0
    %1955 = vxpose.xlu0.b32.start [1/16] %v1921, 128
    %1956 = vxpose.xlu0.b32.cont [2/16] %v1922, 128
    %1957 = vxpose.xlu0.b32.cont [3/16] 0.0, 128
    %1958 = vxpose.xlu0.b32.cont [4/16] 0.0, 128
    %1959 = vxpose.xlu0.b32.cont [5/16] 0.0, 128
    %1960 = vxpose.xlu0.b32.cont [6/16] 0.0, 128
    %1961 = vxpose.xlu0.b32.cont [7/16] 0.0, 128
    %1962 = vxpose.xlu0.b32.cont [8/16] 0.0, 128
    %1963 = vxpose.xlu0.b32.cont [9/16] 0.0, 128
    %1964 = vxpose.xlu0.b32.cont [10/16] 0.0, 128
    %1965 = vxpose.xlu0.b32.cont [11/16] 0.0, 128
    %1966 = vxpose.xlu0.b32.cont [12/16] 0.0, 128
    %1967 = vxpose.xlu0.b32.cont [13/16] 0.0, 128
    %1968 = vxpose.xlu0.b32.cont [14/16] 0.0, 128
    %1969 = vxpose.xlu0.b32.cont [15/16] 0.0, 128
    %1970 = vxpose.xlu0.b32.end [16/16] 0.0, 128
    %v1971 = vpop.trf.xlu0
    %v1972 = vpop.trf.xlu0
    %v1973 = vpop.trf.xlu0
    %v1974 = vpop.trf.xlu0
    %v1975 = vpop.trf.xlu0
    %v1976 = vpop.trf.xlu0
    %v1977 = vpop.trf.xlu0
    %v1978 = vpop.trf.xlu0
    %v1979 = vpop.trf.xlu0
    %v1980 = vpop.trf.xlu0
    %v1981 = vpop.trf.xlu0
    %v1982 = vpop.trf.xlu0
    %v1983 = vpop.trf.xlu0
    %v1984 = vpop.trf.xlu0
    %v1985 = vpop.trf.xlu0
    %v1986 = vpop.trf.xlu0
    %v1987 = vsel %vm46, %v1939, -inf
    %1988 = vmax.xlane.f32.xlu0 %v1987
    %v1989 = vpop.xlane.xlu0 %1988
    %v1990 = vsel %vm46, %v1971, -inf
    %1991 = vmax.xlane.f32.xlu0 %v1990
    %v1992 = vpop.xlane.xlu0 %1991
    %v1993 = vsub.f32 %v1939, %v1989
    %v1994 = vsub.f32 %v1971, %v1992
    %v1995 = vmul.f32 %v1993, 1.442695
    %v1996 = vpow.pop %v1995
    %v1997 = vmul.f32 %v1994, 1.442695
    %v1998 = vpow.pop %v1997
    %v1999 = vsel %vm46, %v1996, 0.0
    %2000 = vadd.xlane.f32.xlu0 %v1999
    %v2001 = vpop.xlane.xlu0 %2000
    %v2002 = vsel %vm46, %v1998, 0.0
    %2003 = vadd.xlane.f32.xlu0 %v2002
    %v2004 = vpop.xlane.xlu0 %2003
    %v2005 = vrcp.pop %v2001
    %v2006 = vmul.f32 %v1996, %v2005
    %v2007 = vrcp.pop %v2004
    %v2008 = vmul.f32 %v1998, %v2007
    %2009 = vst.msk [vmem:[#allocation2] sm:$0xff] %vm46, %v2006
    %2010 = vst.msk [vmem:[#allocation2 + $0x8] sm:$0xff] %vm46, %v2008
    // Predicated region
    $region10: #{my_tr_model_forward.1} parent=1 // pred_check
      _
    $region11: #{my_tr_model_forward.1} parent=1 // pred_check_branch
      %2012 = sbr.rel (0) target = $region13
    $region12: #{my_tr_model_forward.1} parent=1 // pred_region
      %s2014 = ssub.s32 256, 256
      %2015 = vsyncadd [#allocation3], %s2014
      %s2016 = sshll.u32 [#allocation2], 4
      %s2017 = int_to_ptr.vmem [resolvable:$true] %s2016
      %2022 = dma.vmem_to_hbm [thread:$0]  %s2017, 256, %s2, [#allocation3], 128, 128, 8
    $region13: #{my_tr_model_forward.1} parent=1 // pred_fallthru
      _
    // Predicated region
    $region14: #{my_tr_model_forward.1} parent=1 // pred_check
      _
    $region15: #{my_tr_model_forward.1} parent=1 // pred_check_branch
      %2024 = sbr.rel (0) target = $region17
    $region16: #{my_tr_model_forward.1} parent=1 // pred_region
      %2025 = dma.done [#allocation3], 256
    $region17: #{my_tr_model_forward.1} parent=1 // pred_fallthru
      _
    %2026 = vsyncpa [#allocation3], 1

</llo_original>
